<compile_context>
chip_gen: v6e
topology: v6e:2x2x1
jax: 0.10.0
libtpu: 0.0.40
codegen_flags: <defaults>
</compile_context>

<pallas_src>
import math

import jax
import jax.numpy as jnp
from jax.experimental import pallas as pl
from jax.experimental.pallas import tpu as pltpu


D_IN = 28 * 28   # 784


def _round_up(x, m):
    return (x + m - 1) // m * m


# ---------------------------------------------------------------------------
# Kernel: full MLP hot path for one batch tile.  Weights are VMEM-resident.
# ---------------------------------------------------------------------------
def _vae_kernel(
    x_ref,          # (TB, 784)  bf16
    eps_ref,        # (TB, 128)  f32  (real noise in cols 0:2, zeros elsewhere)
    b_ref,          # (8, 896)   f32  packed biases (one row per layer)
    w1_ref,         # (784, 256) bf16 common_fc[0]   (real 784x196)
    w2_ref,         # (256, 128) bf16 common_fc[2]   (real 196x48)
    wh1_ref,        # (128, 256) bf16 fused mean|log_var stage 1
    wh2_ref,        # (256, 256) bf16 fused mean|log_var stage 2 (block-diagonal)
    wd12_ref,       # (128, 256) bf16 decoder fc1 (cols 0:128) | fc2 (cols 128:256)
    wd3_ref,        # (128, 256) bf16 decoder fc3   (real 48x196)
    wd4_ref,        # (256, 784) bf16 decoder fc4   (real 196x784)
    ml_out_ref,     # (TB, 256)  f32  [mean | 0 ... | log_var | 0 ...]
    dec_out_ref,    # (TB, 784)  f32
):
    def mm(h_f32, w):
        # bf16 MXU matmul with explicit f32 accumulation.
        return jnp.dot(h_f32.astype(jnp.bfloat16), w,
                       preferred_element_type=jnp.float32)

    # ----- encoder: common_fc -----
    h = jnp.dot(x_ref[...], w1_ref[...], preferred_element_type=jnp.float32)
    h = jnp.tanh(h + b_ref[0:1, 0:256])                              # (TB, 256)
    h = jnp.tanh(mm(h, w2_ref[...]) + b_ref[1:2, 0:128])             # (TB, 128)

    # ----- fused mean / log_var heads -----
    mv = jnp.tanh(mm(h, wh1_ref[...]) + b_ref[2:3, 0:256])           # (TB, 256)
    ml = mm(mv, wh2_ref[...]) + b_ref[3:4, 0:256]                    # (TB, 256)
    mean = ml[:, 0:128]                                              # real cols 0:2
    log_var = ml[:, 128:256]                                         # real cols 0:2

    # ----- reparameterization (f32): z = eps * exp(0.5*log_var) + mean -----
    z = eps_ref[...] * jnp.exp(0.5 * log_var) + mean                 # (TB, 128)

    # ----- decoder -----
    d = jnp.tanh(mm(z, wd12_ref[:, 0:128]) + b_ref[4:5, 0:128])      # (TB, 128)
    d = jnp.tanh(mm(d, wd12_ref[:, 128:256]) + b_ref[5:6, 0:128])    # (TB, 128)
    d = jnp.tanh(mm(d, wd3_ref[...]) + b_ref[6:7, 0:256])            # (TB, 256)
    d = jnp.tanh(mm(d, wd4_ref[...]) + b_ref[7:8, 0:784])            # (TB, 784)

    ml_out_ref[...] = ml
    dec_out_ref[...] = d


# ---------------------------------------------------------------------------
# Parameters: natural (PyTorch-equivalent) shapes, weights stored (in, out).
# ---------------------------------------------------------------------------
_LAYER_DIMS = [
    (784, 196), (196, 48),          # common_fc
    (48, 16), (16, 2),              # mean_fc
    (48, 16), (16, 2),              # log_var_fc
    (2, 16), (16, 48), (48, 196), (196, 784),   # decoder_fcs
]


def init_params(key):
    params = []
    for (fan_in, fan_out) in _LAYER_DIMS:
        key, kw, kb = jax.random.split(key, 3)
        bound = 1.0 / math.sqrt(fan_in)
        w = jax.random.uniform(kw, (fan_in, fan_out), jnp.float32, -bound, bound)
        b = jax.random.uniform(kb, (1, fan_out), jnp.float32, -bound, bound)
        params.append((w, b))
    return params


def pack_params(params):
    """Zero-pad to lane multiples, cast weights to bf16, pack biases into one slab."""
    (w1, b1), (w2, b2), (wm1, bm1), (wm2, bm2), (wv1, bv1), (wv2, bv2), \
        (wd1, bd1), (wd2, bd2), (wd3, bd3), (wd4, bd4) = params
    bf16 = jnp.bfloat16

    def pad(w, rows, cols):
        out = jnp.zeros((rows, cols), bf16)
        return out.at[:w.shape[0], :w.shape[1]].set(w.astype(bf16))

    W1 = pad(w1, 784, 256)
    W2 = pad(w2, 256, 128)

    Wh1 = jnp.zeros((128, 256), bf16)
    Wh1 = Wh1.at[:48, 0:16].set(wm1.astype(bf16))
    Wh1 = Wh1.at[:48, 128:144].set(wv1.astype(bf16))

    Wh2 = jnp.zeros((256, 256), bf16)
    Wh2 = Wh2.at[0:16, 0:2].set(wm2.astype(bf16))
    Wh2 = Wh2.at[128:144, 128:130].set(wv2.astype(bf16))

    Wd12 = jnp.zeros((128, 256), bf16)
    Wd12 = Wd12.at[0:2, 0:16].set(wd1.astype(bf16))
    Wd12 = Wd12.at[0:16, 128:176].set(wd2.astype(bf16))

    Wd3 = pad(wd3, 128, 256)
    Wd4 = pad(wd4, 256, 784)

    Bsl = jnp.zeros((8, 896), jnp.float32)
    Bsl = Bsl.at[0, 0:196].set(b1[0])
    Bsl = Bsl.at[1, 0:48].set(b2[0])
    Bsl = Bsl.at[2, 0:16].set(bm1[0])
    Bsl = Bsl.at[2, 128:144].set(bv1[0])
    Bsl = Bsl.at[3, 0:2].set(bm2[0])
    Bsl = Bsl.at[3, 128:130].set(bv2[0])
    Bsl = Bsl.at[4, 0:16].set(bd1[0])
    Bsl = Bsl.at[5, 0:48].set(bd2[0])
    Bsl = Bsl.at[6, 0:196].set(bd3[0])
    Bsl = Bsl.at[7, 0:784].set(bd4[0])

    return (Bsl, W1, W2, Wh1, Wh2, Wd12, Wd3, Wd4)


# ---------------------------------------------------------------------------
# Wrapper
# ---------------------------------------------------------------------------
@jax.jit
def vae_forward(x_nchw, eps, packed):
    B = x_nchw.shape[0]
    TB = min(256, _round_up(B, 8))         # batch tile (sublane-aligned; 256 at large B)
    B_pad = _round_up(B, TB)
    grid = (B_pad // TB,)

    x_flat = x_nchw.reshape(B, D_IN).astype(jnp.bfloat16)    # torch.flatten(x, 1)
    if B_pad != B:
        x_flat = jnp.pad(x_flat, ((0, B_pad - B), (0, 0)))
    eps_pad = jnp.zeros((B_pad, 128), jnp.float32).at[:B, 0:2].set(eps)

    biases, W1, W2, Wh1, Wh2, Wd12, Wd3, Wd4 = packed

    def const(shape):   # weights stay resident: same block every grid step
        return pl.BlockSpec(shape, lambda i: (0, 0))

    def row(shape):     # streamed per batch tile
        return pl.BlockSpec(shape, lambda i: (i, 0))

    in_bytes = sum(int(a.size) * a.dtype.itemsize
                   for a in (x_flat, eps_pad, *packed))
    out_bytes = B_pad * (256 + D_IN) * 4
    flops = 2 * B_pad * (784 * 196 + 196 * 48 + 2 * 48 * 16 + 2 * 16 * 2
                         + 2 * 16 + 16 * 48 + 48 * 196 + 196 * 784)
    transcendentals = B_pad * (196 + 48 + 2 * 16 + 2 + 16 + 48 + 196 + 784)

    ml, dec = pl.pallas_call(
        _vae_kernel,
        out_shape=(
            jax.ShapeDtypeStruct((B_pad, 256), jnp.float32),
            jax.ShapeDtypeStruct((B_pad, D_IN), jnp.float32),
        ),
        grid_spec=pltpu.PrefetchScalarGridSpec(
            num_scalar_prefetch=0,
            grid=grid,
            in_specs=[
                row((TB, D_IN)),       # x
                row((TB, 128)),        # eps
                const((8, 896)),       # packed biases
                const((784, 256)),     # W1
                const((256, 128)),     # W2
                const((128, 256)),     # Wh1
                const((256, 256)),     # Wh2
                const((128, 256)),     # Wd12
                const((128, 256)),     # Wd3
                const((256, 784)),     # Wd4
            ],
            out_specs=(row((TB, 256)), row((TB, D_IN))),
        ),
        compiler_params=pltpu.CompilerParams(
            dimension_semantics=("parallel",)),
        cost_estimate=pl.CostEstimate(
            flops=flops,
            transcendentals=transcendentals,
            bytes_accessed=in_bytes + out_bytes),
    )(x_flat, eps_pad, biases, W1, W2, Wh1, Wh2, Wd12, Wd3, Wd4)

    mean = ml[:B, 0:2]
    log_var = ml[:B, 128:130]
    out = dec[:B].reshape(B, 1, 28, 28)
    return mean, log_var, out


# ---------------------------------------------------------------------------
# Pure-JAX f32 reference (matches the PyTorch module exactly).
# ---------------------------------------------------------------------------
def vae_forward_ref(x_nchw, eps, params):
    B = x_nchw.shape[0]
    h = x_nchw.reshape(B, D_IN).astype(jnp.float32)

    def lin(h, p):
        return h @ p[0] + p[1]

    h = jnp.tanh(lin(h, params[0]))
    h = jnp.tanh(lin(h, params[1]))
    mean = lin(jnp.tanh(lin(h, params[2])), params[3])
    log_var = lin(jnp.tanh(lin(h, params[4])), params[5])
    z = eps * jnp.exp(0.5 * log_var) + mean
    d = jnp.tanh(lin(z, params[6]))
    d = jnp.tanh(lin(d, params[7]))
    d = jnp.tanh(lin(d, params[8]))
    d = jnp.tanh(lin(d, params[9]))
    return mean, log_var, d.reshape(B, 1, 28, 28)


if __name__ == "__main__":
    key = jax.random.PRNGKey(0)
    k_params, k_x, k_eps = jax.random.split(key, 3)

    B = 2
    params = init_params(k_params)
    packed = pack_params(params)

    x = jax.random.normal(k_x, (B, 1, 28, 28), jnp.float32)      # NCHW, like PyTorch
    eps = jax.random.normal(k_eps, (B, 2), jnp.float32)          # torch.randn_like(std)

    mean, log_var, out = vae_forward(x, eps, packed)
    jax.block_until_ready((mean, log_var, out))

    mean_r, log_var_r, out_r = vae_forward_ref(x, eps, params)
    assert mean.shape == (B, 2) and log_var.shape == (B, 2) and out.shape == (B, 1, 28, 28)
    # bf16 weights/activations (f32 accumulation) vs full-f32 reference -> loose tolerance.
    assert jnp.allclose(mean, mean_r, atol=5e-2, rtol=5e-2)
    assert jnp.allclose(log_var, log_var_r, atol=5e-2, rtol=5e-2)
    assert jnp.allclose(out, out_r, atol=5e-2, rtol=5e-2)

    print("KERNEL_OK")
</pallas_src>

<mosaic_0001>
module attributes {stable_mosaic.version = 11 : i64} {
  func.func @_vae_kernel(%arg0: i32, %arg1: memref<8x784xbf16, #tpu.memory_space<vmem>>, %arg2: memref<8x128xf32, #tpu.memory_space<vmem>>, %arg3: memref<8x896xf32, #tpu.memory_space<vmem>>, %arg4: memref<784x256xbf16, #tpu.memory_space<vmem>>, %arg5: memref<256x128xbf16, #tpu.memory_space<vmem>>, %arg6: memref<128x256xbf16, #tpu.memory_space<vmem>>, %arg7: memref<256x256xbf16, #tpu.memory_space<vmem>>, %arg8: memref<128x256xbf16, #tpu.memory_space<vmem>>, %arg9: memref<128x256xbf16, #tpu.memory_space<vmem>>, %arg10: memref<256x784xbf16, #tpu.memory_space<vmem>>, %arg11: memref<8x256xf32, #tpu.memory_space<vmem>>, %arg12: memref<8x784xf32, #tpu.memory_space<vmem>>) attributes {dimension_semantics = [#tpu.dimension_semantics<parallel>], iteration_bounds = array<i64: 1>, scalar_prefetch = 0 : i64, scratch_operands = 0 : i64, tpu.core_type = #tpu.core_type<tc>, window_params = [{transform_indices = @transform_0, window_bounds = array<i64: 8, 784>}, {transform_indices = @transform_1, window_bounds = array<i64: 8, 128>}, {pipeline_mode = #tpu.pipeline_mode<synchronous>, transform_indices = @transform_2, window_bounds = array<i64: 8, 896>}, {pipeline_mode = #tpu.pipeline_mode<synchronous>, transform_indices = @transform_3, window_bounds = array<i64: 784, 256>}, {pipeline_mode = #tpu.pipeline_mode<synchronous>, transform_indices = @transform_4, window_bounds = array<i64: 256, 128>}, {pipeline_mode = #tpu.pipeline_mode<synchronous>, transform_indices = @transform_5, window_bounds = array<i64: 128, 256>}, {pipeline_mode = #tpu.pipeline_mode<synchronous>, transform_indices = @transform_6, window_bounds = array<i64: 256, 256>}, {pipeline_mode = #tpu.pipeline_mode<synchronous>, transform_indices = @transform_7, window_bounds = array<i64: 128, 256>}, {pipeline_mode = #tpu.pipeline_mode<synchronous>, transform_indices = @transform_8, window_bounds = array<i64: 128, 256>}, {pipeline_mode = #tpu.pipeline_mode<synchronous>, transform_indices = @transform_9, window_bounds = array<i64: 256, 784>}, {transform_indices = @transform_10, window_bounds = array<i64: 8, 256>}, {transform_indices = @transform_11, window_bounds = array<i64: 8, 784>}]} {
    %c0 = arith.constant 0 : index
    %c0_0 = arith.constant 0 : index
    %0 = vector.load %arg1[%c0, %c0_0] : memref<8x784xbf16, #tpu.memory_space<vmem>>, vector<8x784xbf16>
    %c0_1 = arith.constant 0 : index
    %c0_2 = arith.constant 0 : index
    %1 = vector.load %arg4[%c0_1, %c0_2] : memref<784x256xbf16, #tpu.memory_space<vmem>>, vector<784x256xbf16>
    %cst = arith.constant dense<0.000000e+00> : vector<8x256xf32>
    %2 = tpu.matmul %0, %1, %cst {dimension_numbers = #tpu.dot_dimension_numbers<[1], [0], [0], [1], [0, 0, 1, 1], [], []>} : vector<8x784xbf16>, vector<784x256xbf16>, vector<8x256xf32> -> vector<8x256xf32>
    %c0_3 = arith.constant 0 : index
    %c0_4 = arith.constant 0 : index
    %3 = vector.load %arg3[%c0_3, %c0_4] : memref<8x896xf32, #tpu.memory_space<vmem>>, vector<1x256xf32>
    %4 = vector.broadcast %3 : vector<1x256xf32> to vector<8x256xf32>
    %5 = arith.addf %2, %4 : vector<8x256xf32>
    %6 = math.tanh %5 : vector<8x256xf32>
    %c0_5 = arith.constant 0 : index
    %c0_6 = arith.constant 0 : index
    %7 = vector.load %arg5[%c0_5, %c0_6] : memref<256x128xbf16, #tpu.memory_space<vmem>>, vector<256x128xbf16>
    %8 = arith.truncf %6 : vector<8x256xf32> to vector<8x256xbf16>
    %cst_7 = arith.constant dense<0.000000e+00> : vector<8x128xf32>
    %9 = tpu.matmul %8, %7, %cst_7 {dimension_numbers = #tpu.dot_dimension_numbers<[1], [0], [0], [1], [0, 0, 1, 1], [], []>} : vector<8x256xbf16>, vector<256x128xbf16>, vector<8x128xf32> -> vector<8x128xf32>
    %c1 = arith.constant 1 : index
    %c0_8 = arith.constant 0 : index
    %10 = vector.load %arg3[%c1, %c0_8] : memref<8x896xf32, #tpu.memory_space<vmem>>, vector<1x128xf32>
    %11 = vector.broadcast %10 : vector<1x128xf32> to vector<8x128xf32>
    %12 = arith.addf %9, %11 : vector<8x128xf32>
    %13 = math.tanh %12 : vector<8x128xf32>
    %c0_9 = arith.constant 0 : index
    %c0_10 = arith.constant 0 : index
    %14 = vector.load %arg6[%c0_9, %c0_10] : memref<128x256xbf16, #tpu.memory_space<vmem>>, vector<128x256xbf16>
    %15 = arith.truncf %13 : vector<8x128xf32> to vector<8x128xbf16>
    %cst_11 = arith.constant dense<0.000000e+00> : vector<8x256xf32>
    %16 = tpu.matmul %15, %14, %cst_11 {dimension_numbers = #tpu.dot_dimension_numbers<[1], [0], [0], [1], [0, 0, 1, 1], [], []>} : vector<8x128xbf16>, vector<128x256xbf16>, vector<8x256xf32> -> vector<8x256xf32>
    %c2 = arith.constant 2 : index
    %c0_12 = arith.constant 0 : index
    %17 = vector.load %arg3[%c2, %c0_12] : memref<8x896xf32, #tpu.memory_space<vmem>>, vector<1x256xf32>
    %18 = vector.broadcast %17 : vector<1x256xf32> to vector<8x256xf32>
    %19 = arith.addf %16, %18 : vector<8x256xf32>
    %20 = math.tanh %19 : vector<8x256xf32>
    %c0_13 = arith.constant 0 : index
    %c0_14 = arith.constant 0 : index
    %21 = vector.load %arg7[%c0_13, %c0_14] : memref<256x256xbf16, #tpu.memory_space<vmem>>, vector<256x256xbf16>
    %22 = arith.truncf %20 : vector<8x256xf32> to vector<8x256xbf16>
    %cst_15 = arith.constant dense<0.000000e+00> : vector<8x256xf32>
    %23 = tpu.matmul %22, %21, %cst_15 {dimension_numbers = #tpu.dot_dimension_numbers<[1], [0], [0], [1], [0, 0, 1, 1], [], []>} : vector<8x256xbf16>, vector<256x256xbf16>, vector<8x256xf32> -> vector<8x256xf32>
    %c3 = arith.constant 3 : index
    %c0_16 = arith.constant 0 : index
    %24 = vector.load %arg3[%c3, %c0_16] : memref<8x896xf32, #tpu.memory_space<vmem>>, vector<1x256xf32>
    %25 = vector.broadcast %24 : vector<1x256xf32> to vector<8x256xf32>
    %26 = arith.addf %23, %25 : vector<8x256xf32>
    %27 = vector.extract_strided_slice %26 {offsets = [0, 0], sizes = [8, 128], strides = [1, 1]} : vector<8x256xf32> to vector<8x128xf32>
    %28 = vector.extract_strided_slice %26 {offsets = [0, 128], sizes = [8, 128], strides = [1, 1]} : vector<8x256xf32> to vector<8x128xf32>
    %c0_17 = arith.constant 0 : index
    %c0_18 = arith.constant 0 : index
    %29 = vector.load %arg2[%c0_17, %c0_18] : memref<8x128xf32, #tpu.memory_space<vmem>>, vector<8x128xf32>
    %cst_19 = arith.constant 5.000000e-01 : f32
    %30 = vector.broadcast %cst_19 : f32 to vector<8x128xf32>
    %31 = arith.mulf %30, %28 : vector<8x128xf32>
    %32 = math.exp %31 : vector<8x128xf32>
    %33 = arith.mulf %29, %32 : vector<8x128xf32>
    %34 = arith.addf %33, %27 : vector<8x128xf32>
    %c0_20 = arith.constant 0 : index
    %c0_21 = arith.constant 0 : index
    %35 = vector.load %arg8[%c0_20, %c0_21] : memref<128x256xbf16, #tpu.memory_space<vmem>>, vector<128x128xbf16>
    %36 = arith.truncf %34 : vector<8x128xf32> to vector<8x128xbf16>
    %cst_22 = arith.constant dense<0.000000e+00> : vector<8x128xf32>
    %37 = tpu.matmul %36, %35, %cst_22 {dimension_numbers = #tpu.dot_dimension_numbers<[1], [0], [0], [1], [0, 0, 1, 1], [], []>} : vector<8x128xbf16>, vector<128x128xbf16>, vector<8x128xf32> -> vector<8x128xf32>
    %c4 = arith.constant 4 : index
    %c0_23 = arith.constant 0 : index
    %38 = vector.load %arg3[%c4, %c0_23] : memref<8x896xf32, #tpu.memory_space<vmem>>, vector<1x128xf32>
    %39 = vector.broadcast %38 : vector<1x128xf32> to vector<8x128xf32>
    %40 = arith.addf %37, %39 : vector<8x128xf32>
    %41 = math.tanh %40 : vector<8x128xf32>
    %c0_24 = arith.constant 0 : index
    %c128 = arith.constant 128 : index
    %42 = vector.load %arg8[%c0_24, %c128] : memref<128x256xbf16, #tpu.memory_space<vmem>>, vector<128x128xbf16>
    %43 = arith.truncf %41 : vector<8x128xf32> to vector<8x128xbf16>
    %cst_25 = arith.constant dense<0.000000e+00> : vector<8x128xf32>
    %44 = tpu.matmul %43, %42, %cst_25 {dimension_numbers = #tpu.dot_dimension_numbers<[1], [0], [0], [1], [0, 0, 1, 1], [], []>} : vector<8x128xbf16>, vector<128x128xbf16>, vector<8x128xf32> -> vector<8x128xf32>
    %c5 = arith.constant 5 : index
    %c0_26 = arith.constant 0 : index
    %45 = vector.load %arg3[%c5, %c0_26] : memref<8x896xf32, #tpu.memory_space<vmem>>, vector<1x128xf32>
    %46 = vector.broadcast %45 : vector<1x128xf32> to vector<8x128xf32>
    %47 = arith.addf %44, %46 : vector<8x128xf32>
    %48 = math.tanh %47 : vector<8x128xf32>
    %c0_27 = arith.constant 0 : index
    %c0_28 = arith.constant 0 : index
    %49 = vector.load %arg9[%c0_27, %c0_28] : memref<128x256xbf16, #tpu.memory_space<vmem>>, vector<128x256xbf16>
    %50 = arith.truncf %48 : vector<8x128xf32> to vector<8x128xbf16>
    %cst_29 = arith.constant dense<0.000000e+00> : vector<8x256xf32>
    %51 = tpu.matmul %50, %49, %cst_29 {dimension_numbers = #tpu.dot_dimension_numbers<[1], [0], [0], [1], [0, 0, 1, 1], [], []>} : vector<8x128xbf16>, vector<128x256xbf16>, vector<8x256xf32> -> vector<8x256xf32>
    %c6 = arith.constant 6 : index
    %c0_30 = arith.constant 0 : index
    %52 = vector.load %arg3[%c6, %c0_30] : memref<8x896xf32, #tpu.memory_space<vmem>>, vector<1x256xf32>
    %53 = vector.broadcast %52 : vector<1x256xf32> to vector<8x256xf32>
    %54 = arith.addf %51, %53 : vector<8x256xf32>
    %55 = math.tanh %54 : vector<8x256xf32>
    %c0_31 = arith.constant 0 : index
    %c0_32 = arith.constant 0 : index
    %56 = vector.load %arg10[%c0_31, %c0_32] : memref<256x784xbf16, #tpu.memory_space<vmem>>, vector<256x784xbf16>
    %57 = arith.truncf %55 : vector<8x256xf32> to vector<8x256xbf16>
    %cst_33 = arith.constant dense<0.000000e+00> : vector<8x784xf32>
    %58 = tpu.matmul %57, %56, %cst_33 {dimension_numbers = #tpu.dot_dimension_numbers<[1], [0], [0], [1], [0, 0, 1, 1], [], []>} : vector<8x256xbf16>, vector<256x784xbf16>, vector<8x784xf32> -> vector<8x784xf32>
    %c7 = arith.constant 7 : index
    %c0_34 = arith.constant 0 : index
    %59 = vector.load %arg3[%c7, %c0_34] : memref<8x896xf32, #tpu.memory_space<vmem>>, vector<1x784xf32>
    %60 = vector.broadcast %59 : vector<1x784xf32> to vector<8x784xf32>
    %61 = arith.addf %58, %60 : vector<8x784xf32>
    %62 = math.tanh %61 : vector<8x784xf32>
    %c0_35 = arith.constant 0 : index
    %c0_36 = arith.constant 0 : index
    %63 = vector.load %arg11[%c0_35, %c0_36] : memref<8x256xf32, #tpu.memory_space<vmem>>, vector<8x256xf32>
    tpu.vector_store %arg11[%c0_35, %c0_36], %26 {strides = array<i32>} : memref<8x256xf32, #tpu.memory_space<vmem>>, vector<8x256xf32>,
    %c0_37 = arith.constant 0 : index
    %c0_38 = arith.constant 0 : index
    %64 = vector.load %arg12[%c0_37, %c0_38] : memref<8x784xf32, #tpu.memory_space<vmem>>, vector<8x784xf32>
    tpu.vector_store %arg12[%c0_37, %c0_38], %62 {strides = array<i32>} : memref<8x784xf32, #tpu.memory_space<vmem>>, vector<8x784xf32>,
    return
  }
  func.func @transform_0(%arg0: i32) -> (i32, i32) {
    %c0_i32 = arith.constant 0 : i32
    %c0_i32_0 = arith.constant 0 : i32
    return %arg0, %c0_i32 : i32, i32
  }
  func.func @transform_1(%arg0: i32) -> (i32, i32) {
    %c0_i32 = arith.constant 0 : i32
    %c0_i32_0 = arith.constant 0 : i32
    return %arg0, %c0_i32 : i32, i32
  }
  func.func @transform_2(%arg0: i32) -> (i32, i32) {
    %c0_i32 = arith.constant 0 : i32
    %c0_i32_0 = arith.constant 0 : i32
    %c0_i32_1 = arith.constant 0 : i32
    return %c0_i32, %c0_i32_0 : i32, i32
  }
  func.func @transform_3(%arg0: i32) -> (i32, i32) {
    %c0_i32 = arith.constant 0 : i32
    %c0_i32_0 = arith.constant 0 : i32
    %c0_i32_1 = arith.constant 0 : i32
    return %c0_i32, %c0_i32_0 : i32, i32
  }
  func.func @transform_4(%arg0: i32) -> (i32, i32) {
    %c0_i32 = arith.constant 0 : i32
    %c0_i32_0 = arith.constant 0 : i32
    %c0_i32_1 = arith.constant 0 : i32
    return %c0_i32, %c0_i32_0 : i32, i32
  }
  func.func @transform_5(%arg0: i32) -> (i32, i32) {
    %c0_i32 = arith.constant 0 : i32
    %c0_i32_0 = arith.constant 0 : i32
    %c0_i32_1 = arith.constant 0 : i32
    return %c0_i32, %c0_i32_0 : i32, i32
  }
  func.func @transform_6(%arg0: i32) -> (i32, i32) {
    %c0_i32 = arith.constant 0 : i32
    %c0_i32_0 = arith.constant 0 : i32
    %c0_i32_1 = arith.constant 0 : i32
    return %c0_i32, %c0_i32_0 : i32, i32
  }
  func.func @transform_7(%arg0: i32) -> (i32, i32) {
    %c0_i32 = arith.constant 0 : i32
    %c0_i32_0 = arith.constant 0 : i32
    %c0_i32_1 = arith.constant 0 : i32
    return %c0_i32, %c0_i32_0 : i32, i32
  }
  func.func @transform_8(%arg0: i32) -> (i32, i32) {
    %c0_i32 = arith.constant 0 : i32
    %c0_i32_0 = arith.constant 0 : i32
    %c0_i32_1 = arith.constant 0 : i32
    return %c0_i32, %c0_i32_0 : i32, i32
  }
  func.func @transform_9(%arg0: i32) -> (i32, i32) {
    %c0_i32 = arith.constant 0 : i32
    %c0_i32_0 = arith.constant 0 : i32
    %c0_i32_1 = arith.constant 0 : i32
    return %c0_i32, %c0_i32_0 : i32, i32
  }
  func.func @transform_10(%arg0: i32) -> (i32, i32) {
    %c0_i32 = arith.constant 0 : i32
    %c0_i32_0 = arith.constant 0 : i32
    return %arg0, %c0_i32 : i32, i32
  }
  func.func @transform_11(%arg0: i32) -> (i32, i32) {
    %c0_i32 = arith.constant 0 : i32
    %c0_i32_0 = arith.constant 0 : i32
    return %arg0, %c0_i32 : i32, i32
  }
}

</mosaic_0001>

<llo_original>
// kernel: vae_forward.1
$region0: #{vae_forward.1}
  #allocation0 [shape = 'u32[]', space=smem, size = 0x4, offset = 0x4, fixed_abs, tag = 'smem constant byte address 0x4 - core index']
  #allocation1 [shape = 'u32[144,128]{1,0:T(1,128)}', space=vmem, size = 0x12000, scoped, tag = 'internal scratch']
  %s0 = inlined_call_operand.vmem [shape: bf16[8,784], index: 0, kind: input, shape index: {}]
  %s1 = inlined_call_operand.vmem [shape: f32[8,128], index: 1, kind: input, shape index: {}]
  %s2 = inlined_call_operand.vmem [shape: f32[8,896], index: 2, kind: input, shape index: {}]
  %s3 = inlined_call_operand.vmem [shape: bf16[784,256], index: 3, kind: input, shape index: {}]
  %s4 = inlined_call_operand.vmem [shape: bf16[256,128], index: 4, kind: input, shape index: {}]
  %s5 = inlined_call_operand.vmem [shape: bf16[128,256], index: 5, kind: input, shape index: {}]
  %s6 = inlined_call_operand.vmem [shape: bf16[256,256], index: 6, kind: input, shape index: {}]
  %s7 = inlined_call_operand.vmem [shape: bf16[128,256], index: 7, kind: input, shape index: {}]
  %s8 = inlined_call_operand.vmem [shape: bf16[128,256], index: 8, kind: input, shape index: {}]
  %s9 = inlined_call_operand.vmem [shape: bf16[256,784], index: 9, kind: input, shape index: {}]
  %s10 = inlined_call_operand.vmem [shape: f32[8,256], index: 10, kind: output, shape index: {0}]
  %s11 = inlined_call_operand.vmem [shape: f32[8,784], index: 11, kind: output, shape index: {1}]
  %12 = xla_tuple %s10, %s11
  %s13 = sld [smem:[#allocation0]]
  $region58: #{vae_forward.1} parent=0
    _
  %s15 = ssub.s32 1, %s13
  %s16 = scalar_select 0, %s15, %s13
  // Predicated region
  $region2: #{vae_forward.1} parent=0 // pred_check
    _
  $region3: #{vae_forward.1} parent=0 // pred_check_branch
    %18 = sbr.rel (0) target = $region5
  $region4: #{vae_forward.1} parent=0 // pred_region
    _
  $region5: #{vae_forward.1} parent=0 // pred_fallthru
    _
  // Predicated region
  $region6: #{vae_forward.1} parent=0 // pred_check
    _
  $region7: #{vae_forward.1} parent=0 // pred_check_branch
    %20 = sbr.rel (0) target = $region9
  $region8: #{vae_forward.1} parent=0 // pred_region
    _
  $region9: #{vae_forward.1} parent=0 // pred_fallthru
    _
  // Predicated region
  $region10: #{vae_forward.1} parent=0 // pred_check
    _
  $region11: #{vae_forward.1} parent=0 // pred_check_branch
    %22 = sbr.rel (0) target = $region13
  $region12: #{vae_forward.1} parent=0 // pred_region
    _
  $region13: #{vae_forward.1} parent=0 // pred_fallthru
    _
  // Predicated region
  $region14: #{vae_forward.1} parent=0 // pred_check
    _
  $region15: #{vae_forward.1} parent=0 // pred_check_branch
    %24 = sbr.rel (0) target = $region17
  $region16: #{vae_forward.1} parent=0 // pred_region
    _
  $region17: #{vae_forward.1} parent=0 // pred_fallthru
    _
  // Predicated region
  $region18: #{vae_forward.1} parent=0 // pred_check
    _
  $region19: #{vae_forward.1} parent=0 // pred_check_branch
    %26 = sbr.rel (0) target = $region21
  $region20: #{vae_forward.1} parent=0 // pred_region
    _
  $region21: #{vae_forward.1} parent=0 // pred_fallthru
    _
  // Predicated region
  $region22: #{vae_forward.1} parent=0 // pred_check
    _
  $region23: #{vae_forward.1} parent=0 // pred_check_branch
    %28 = sbr.rel (0) target = $region25
  $region24: #{vae_forward.1} parent=0 // pred_region
    _
  $region25: #{vae_forward.1} parent=0 // pred_fallthru
    _
  // Predicated region
  $region26: #{vae_forward.1} parent=0 // pred_check
    _
  $region27: #{vae_forward.1} parent=0 // pred_check_branch
    %30 = sbr.rel (0) target = $region29
  $region28: #{vae_forward.1} parent=0 // pred_region
    _
  $region29: #{vae_forward.1} parent=0 // pred_fallthru
    _
  // Predicated region
  $region30: #{vae_forward.1} parent=0 // pred_check
    _
  $region31: #{vae_forward.1} parent=0 // pred_check_branch
    %32 = sbr.rel (0) target = $region33
  $region32: #{vae_forward.1} parent=0 // pred_region
    _
  $region33: #{vae_forward.1} parent=0 // pred_fallthru
    _
  // Predicated region
  $region34: #{vae_forward.1} parent=0 // pred_check
    _
  $region35: #{vae_forward.1} parent=0 // pred_check_branch
    %34 = sbr.rel (0) target = $region37
  $region36: #{vae_forward.1} parent=0 // pred_region
    _
  $region37: #{vae_forward.1} parent=0 // pred_fallthru
    _
  // Predicated region
  $region38: #{vae_forward.1} parent=0 // pred_check
    _
  $region39: #{vae_forward.1} parent=0 // pred_check_branch
    %36 = sbr.rel (0) target = $region41
  $region40: #{vae_forward.1} parent=0 // pred_region
    _
  $region41: #{vae_forward.1} parent=0 // pred_fallthru
    _
  %v38 = vld [vmem:[%s0] sm:$0xff]
  %v39 = vld [vmem:[%s0 + $0x8] sm:$0xff]
  %v40 = vld [vmem:[%s0 + $0x10] sm:$0xff]
  %v41 = vld [vmem:[%s0 + $0x18] sm:$0xf]
  %v42 = vld [vmem:[%s3] sm:$0xff]
  %v43 = vld [vmem:[%s3 + $0x8] sm:$0xff]
  %v44 = vld [vmem:[%s3 + $0x10] sm:$0xff]
  %v45 = vld [vmem:[%s3 + $0x18] sm:$0xff]
  %v46 = vld [vmem:[%s3 + $0x20] sm:$0xff]
  %v47 = vld [vmem:[%s3 + $0x28] sm:$0xff]
  %v48 = vld [vmem:[%s3 + $0x30] sm:$0xff]
  %v49 = vld [vmem:[%s3 + $0x38] sm:$0xff]
  %v50 = vld [vmem:[%s3 + $0x40] sm:$0xff]
  %v51 = vld [vmem:[%s3 + $0x48] sm:$0xff]
  %v52 = vld [vmem:[%s3 + $0x50] sm:$0xff]
  %v53 = vld [vmem:[%s3 + $0x58] sm:$0xff]
  %v54 = vld [vmem:[%s3 + $0x60] sm:$0xff]
  %v55 = vld [vmem:[%s3 + $0x68] sm:$0xff]
  %v56 = vld [vmem:[%s3 + $0x70] sm:$0xff]
  %v57 = vld [vmem:[%s3 + $0x78] sm:$0xff]
  %v58 = vld [vmem:[%s3 + $0x80] sm:$0xff]
  %v59 = vld [vmem:[%s3 + $0x88] sm:$0xff]
  %v60 = vld [vmem:[%s3 + $0x90] sm:$0xff]
  %v61 = vld [vmem:[%s3 + $0x98] sm:$0xff]
  %v62 = vld [vmem:[%s3 + $0xa0] sm:$0xff]
  %v63 = vld [vmem:[%s3 + $0xa8] sm:$0xff]
  %v64 = vld [vmem:[%s3 + $0xb0] sm:$0xff]
  %v65 = vld [vmem:[%s3 + $0xb8] sm:$0xff]
  %v66 = vld [vmem:[%s3 + $0xc0] sm:$0xff]
  %v67 = vld [vmem:[%s3 + $0xc8] sm:$0xff]
  %v68 = vld [vmem:[%s3 + $0xd0] sm:$0xff]
  %v69 = vld [vmem:[%s3 + $0xd8] sm:$0xff]
  %v70 = vld [vmem:[%s3 + $0xe0] sm:$0xff]
  %v71 = vld [vmem:[%s3 + $0xe8] sm:$0xff]
  %v72 = vld [vmem:[%s3 + $0xf0] sm:$0xff]
  %v73 = vld [vmem:[%s3 + $0xf8] sm:$0xff]
  %v74 = vld [vmem:[%s3 + $0x100] sm:$0xff]
  %v75 = vld [vmem:[%s3 + $0x108] sm:$0xff]
  %v76 = vld [vmem:[%s3 + $0x110] sm:$0xff]
  %v77 = vld [vmem:[%s3 + $0x118] sm:$0xff]
  %v78 = vld [vmem:[%s3 + $0x120] sm:$0xff]
  %v79 = vld [vmem:[%s3 + $0x128] sm:$0xff]
  %v80 = vld [vmem:[%s3 + $0x130] sm:$0xff]
  %v81 = vld [vmem:[%s3 + $0x138] sm:$0xff]
  %v82 = vld [vmem:[%s3 + $0x140] sm:$0xff]
  %v83 = vld [vmem:[%s3 + $0x148] sm:$0xff]
  %v84 = vld [vmem:[%s3 + $0x150] sm:$0xff]
  %v85 = vld [vmem:[%s3 + $0x158] sm:$0xff]
  %v86 = vld [vmem:[%s3 + $0x160] sm:$0xff]
  %v87 = vld [vmem:[%s3 + $0x168] sm:$0xff]
  %v88 = vld [vmem:[%s3 + $0x170] sm:$0xff]
  %v89 = vld [vmem:[%s3 + $0x178] sm:$0xff]
  %v90 = vld [vmem:[%s3 + $0x180] sm:$0xff]
  %v91 = vld [vmem:[%s3 + $0x188] sm:$0xff]
  %v92 = vld [vmem:[%s3 + $0x190] sm:$0xff]
  %v93 = vld [vmem:[%s3 + $0x198] sm:$0xff]
  %v94 = vld [vmem:[%s3 + $0x1a0] sm:$0xff]
  %v95 = vld [vmem:[%s3 + $0x1a8] sm:$0xff]
  %v96 = vld [vmem:[%s3 + $0x1b0] sm:$0xff]
  %v97 = vld [vmem:[%s3 + $0x1b8] sm:$0xff]
  %v98 = vld [vmem:[%s3 + $0x1c0] sm:$0xff]
  %v99 = vld [vmem:[%s3 + $0x1c8] sm:$0xff]
  %v100 = vld [vmem:[%s3 + $0x1d0] sm:$0xff]
  %v101 = vld [vmem:[%s3 + $0x1d8] sm:$0xff]
  %v102 = vld [vmem:[%s3 + $0x1e0] sm:$0xff]
  %v103 = vld [vmem:[%s3 + $0x1e8] sm:$0xff]
  %v104 = vld [vmem:[%s3 + $0x1f0] sm:$0xff]
  %v105 = vld [vmem:[%s3 + $0x1f8] sm:$0xff]
  %v106 = vld [vmem:[%s3 + $0x200] sm:$0xff]
  %v107 = vld [vmem:[%s3 + $0x208] sm:$0xff]
  %v108 = vld [vmem:[%s3 + $0x210] sm:$0xff]
  %v109 = vld [vmem:[%s3 + $0x218] sm:$0xff]
  %v110 = vld [vmem:[%s3 + $0x220] sm:$0xff]
  %v111 = vld [vmem:[%s3 + $0x228] sm:$0xff]
  %v112 = vld [vmem:[%s3 + $0x230] sm:$0xff]
  %v113 = vld [vmem:[%s3 + $0x238] sm:$0xff]
  %v114 = vld [vmem:[%s3 + $0x240] sm:$0xff]
  %v115 = vld [vmem:[%s3 + $0x248] sm:$0xff]
  %v116 = vld [vmem:[%s3 + $0x250] sm:$0xff]
  %v117 = vld [vmem:[%s3 + $0x258] sm:$0xff]
  %v118 = vld [vmem:[%s3 + $0x260] sm:$0xff]
  %v119 = vld [vmem:[%s3 + $0x268] sm:$0xff]
  %v120 = vld [vmem:[%s3 + $0x270] sm:$0xff]
  %v121 = vld [vmem:[%s3 + $0x278] sm:$0xff]
  %v122 = vld [vmem:[%s3 + $0x280] sm:$0xff]
  %v123 = vld [vmem:[%s3 + $0x288] sm:$0xff]
  %v124 = vld [vmem:[%s3 + $0x290] sm:$0xff]
  %v125 = vld [vmem:[%s3 + $0x298] sm:$0xff]
  %v126 = vld [vmem:[%s3 + $0x2a0] sm:$0xff]
  %v127 = vld [vmem:[%s3 + $0x2a8] sm:$0xff]
  %v128 = vld [vmem:[%s3 + $0x2b0] sm:$0xff]
  %v129 = vld [vmem:[%s3 + $0x2b8] sm:$0xff]
  %v130 = vld [vmem:[%s3 + $0x2c0] sm:$0xff]
  %v131 = vld [vmem:[%s3 + $0x2c8] sm:$0xff]
  %v132 = vld [vmem:[%s3 + $0x2d0] sm:$0xff]
  %v133 = vld [vmem:[%s3 + $0x2d8] sm:$0xff]
  %v134 = vld [vmem:[%s3 + $0x2e0] sm:$0xff]
  %v135 = vld [vmem:[%s3 + $0x2e8] sm:$0xff]
  %v136 = vld [vmem:[%s3 + $0x2f0] sm:$0xff]
  %v137 = vld [vmem:[%s3 + $0x2f8] sm:$0xff]
  %v138 = vld [vmem:[%s3 + $0x300] sm:$0xff]
  %v139 = vld [vmem:[%s3 + $0x308] sm:$0xff]
  %v140 = vld [vmem:[%s2] ss:$8 sm:$0x3]
  %v142 = vlaneseq
  %v143 = vshrl.u32 %v142, 7
  %v144 = vsub.s32 0, %v143
  %v145 = vrot.slane %v140, %v144
  %v146 = vlaneseq
  %v147 = vshrl.u32 %v146, 7
  %v148 = vsub.s32 1, %v147
  %v149 = vrot.slane %v140, %v148
  %v156 = vunpack.c.l.b16 %v38
  %v157 = vunpack.c.h.b16 %v38
  %v158 = vunpack.c.l.b16 %v39
  %v159 = vunpack.c.h.b16 %v39
  %v160 = vunpack.c.l.b16 %v40
  %v161 = vunpack.c.h.b16 %v40
  %v162 = vunpack.c.l.b16 %v41
  %v163 = vpack.c.b16 %v156, %v156
  %v164 = vpack.c.b16 %v157, %v157
  %v165 = vpack.c.b16 %v158, %v158
  %v166 = vpack.c.b16 %v159, %v159
  %v167 = vpack.c.b16 %v160, %v160
  %v168 = vpack.c.b16 %v161, %v161
  %v169 = vpack.c.b16 %v162, %v162
  %v274 = vunpack.c.l.b16 %v42
  %v275 = vunpack.c.h.b16 %v42
  %v276 = vunpack.c.l.b16 %v43
  %v277 = vunpack.c.h.b16 %v43
  %v278 = vunpack.c.l.b16 %v44
  %v279 = vunpack.c.h.b16 %v44
  %v280 = vunpack.c.l.b16 %v45
  %v281 = vunpack.c.h.b16 %v45
  %v282 = vunpack.c.l.b16 %v46
  %v283 = vunpack.c.h.b16 %v46
  %v284 = vunpack.c.l.b16 %v47
  %v285 = vunpack.c.h.b16 %v47
  %v286 = vunpack.c.l.b16 %v48
  %v287 = vunpack.c.h.b16 %v48
  %v288 = vunpack.c.l.b16 %v49
  %v289 = vunpack.c.h.b16 %v49
  %v290 = vunpack.c.l.b16 %v50
  %v291 = vunpack.c.h.b16 %v50
  %v292 = vunpack.c.l.b16 %v51
  %v293 = vunpack.c.h.b16 %v51
  %v294 = vunpack.c.l.b16 %v52
  %v295 = vunpack.c.h.b16 %v52
  %v296 = vunpack.c.l.b16 %v53
  %v297 = vunpack.c.h.b16 %v53
  %v298 = vunpack.c.l.b16 %v54
  %v299 = vunpack.c.h.b16 %v54
  %v300 = vunpack.c.l.b16 %v55
  %v301 = vunpack.c.h.b16 %v55
  %v302 = vunpack.c.l.b16 %v56
  %v303 = vunpack.c.h.b16 %v56
  %v304 = vunpack.c.l.b16 %v57
  %v305 = vunpack.c.h.b16 %v57
  %v306 = vunpack.c.l.b16 %v58
  %v307 = vunpack.c.h.b16 %v58
  %v308 = vunpack.c.l.b16 %v59
  %v309 = vunpack.c.h.b16 %v59
  %v310 = vunpack.c.l.b16 %v60
  %v311 = vunpack.c.h.b16 %v60
  %v312 = vunpack.c.l.b16 %v61
  %v313 = vunpack.c.h.b16 %v61
  %v314 = vunpack.c.l.b16 %v62
  %v315 = vunpack.c.h.b16 %v62
  %v316 = vunpack.c.l.b16 %v63
  %v317 = vunpack.c.h.b16 %v63
  %v318 = vunpack.c.l.b16 %v64
  %v319 = vunpack.c.h.b16 %v64
  %v320 = vunpack.c.l.b16 %v65
  %v321 = vunpack.c.h.b16 %v65
  %v322 = vunpack.c.l.b16 %v66
  %v323 = vunpack.c.h.b16 %v66
  %v324 = vunpack.c.l.b16 %v67
  %v325 = vunpack.c.h.b16 %v67
  %v326 = vunpack.c.l.b16 %v68
  %v327 = vunpack.c.h.b16 %v68
  %v328 = vunpack.c.l.b16 %v69
  %v329 = vunpack.c.h.b16 %v69
  %v330 = vunpack.c.l.b16 %v70
  %v331 = vunpack.c.h.b16 %v70
  %v332 = vunpack.c.l.b16 %v71
  %v333 = vunpack.c.h.b16 %v71
  %v334 = vunpack.c.l.b16 %v72
  %v335 = vunpack.c.h.b16 %v72
  %v336 = vunpack.c.l.b16 %v73
  %v337 = vunpack.c.h.b16 %v73
  %v338 = vunpack.c.l.b16 %v74
  %v339 = vunpack.c.h.b16 %v74
  %v340 = vunpack.c.l.b16 %v75
  %v341 = vunpack.c.h.b16 %v75
  %v342 = vunpack.c.l.b16 %v76
  %v343 = vunpack.c.h.b16 %v76
  %v344 = vunpack.c.l.b16 %v77
  %v345 = vunpack.c.h.b16 %v77
  %v346 = vunpack.c.l.b16 %v78
  %v347 = vunpack.c.h.b16 %v78
  %v348 = vunpack.c.l.b16 %v79
  %v349 = vunpack.c.h.b16 %v79
  %v350 = vunpack.c.l.b16 %v80
  %v351 = vunpack.c.h.b16 %v80
  %v352 = vunpack.c.l.b16 %v81
  %v353 = vunpack.c.h.b16 %v81
  %v354 = vunpack.c.l.b16 %v82
  %v355 = vunpack.c.h.b16 %v82
  %v356 = vunpack.c.l.b16 %v83
  %v357 = vunpack.c.h.b16 %v83
  %v358 = vunpack.c.l.b16 %v84
  %v359 = vunpack.c.h.b16 %v84
  %v360 = vunpack.c.l.b16 %v85
  %v361 = vunpack.c.h.b16 %v85
  %v362 = vunpack.c.l.b16 %v86
  %v363 = vunpack.c.h.b16 %v86
  %v364 = vunpack.c.l.b16 %v87
  %v365 = vunpack.c.h.b16 %v87
  %v366 = vunpack.c.l.b16 %v88
  %v367 = vunpack.c.h.b16 %v88
  %v368 = vunpack.c.l.b16 %v89
  %v369 = vunpack.c.h.b16 %v89
  %v370 = vunpack.c.l.b16 %v90
  %v371 = vunpack.c.h.b16 %v90
  %v372 = vunpack.c.l.b16 %v91
  %v373 = vunpack.c.h.b16 %v91
  %v374 = vunpack.c.l.b16 %v92
  %v375 = vunpack.c.h.b16 %v92
  %v376 = vunpack.c.l.b16 %v93
  %v377 = vunpack.c.h.b16 %v93
  %v378 = vunpack.c.l.b16 %v94
  %v379 = vunpack.c.h.b16 %v94
  %v380 = vunpack.c.l.b16 %v95
  %v381 = vunpack.c.h.b16 %v95
  %v382 = vunpack.c.l.b16 %v96
  %v383 = vunpack.c.h.b16 %v96
  %v384 = vunpack.c.l.b16 %v97
  %v385 = vunpack.c.h.b16 %v97
  %v386 = vunpack.c.l.b16 %v98
  %v387 = vunpack.c.h.b16 %v98
  %v388 = vunpack.c.l.b16 %v99
  %v389 = vunpack.c.h.b16 %v99
  %v390 = vunpack.c.l.b16 %v100
  %v391 = vunpack.c.h.b16 %v100
  %v392 = vunpack.c.l.b16 %v101
  %v393 = vunpack.c.h.b16 %v101
  %v394 = vunpack.c.l.b16 %v102
  %v395 = vunpack.c.h.b16 %v102
  %v396 = vunpack.c.l.b16 %v103
  %v397 = vunpack.c.h.b16 %v103
  %v398 = vunpack.c.l.b16 %v104
  %v399 = vunpack.c.h.b16 %v104
  %v400 = vunpack.c.l.b16 %v105
  %v401 = vunpack.c.h.b16 %v105
  %v402 = vunpack.c.l.b16 %v106
  %v403 = vunpack.c.h.b16 %v106
  %v404 = vunpack.c.l.b16 %v107
  %v405 = vunpack.c.h.b16 %v107
  %v406 = vunpack.c.l.b16 %v108
  %v407 = vunpack.c.h.b16 %v108
  %v408 = vunpack.c.l.b16 %v109
  %v409 = vunpack.c.h.b16 %v109
  %v410 = vunpack.c.l.b16 %v110
  %v411 = vunpack.c.h.b16 %v110
  %v412 = vunpack.c.l.b16 %v111
  %v413 = vunpack.c.h.b16 %v111
  %v414 = vunpack.c.l.b16 %v112
  %v415 = vunpack.c.h.b16 %v112
  %v416 = vunpack.c.l.b16 %v113
  %v417 = vunpack.c.h.b16 %v113
  %v418 = vunpack.c.l.b16 %v114
  %v419 = vunpack.c.h.b16 %v114
  %v420 = vunpack.c.l.b16 %v115
  %v421 = vunpack.c.h.b16 %v115
  %v422 = vunpack.c.l.b16 %v116
  %v423 = vunpack.c.h.b16 %v116
  %v424 = vunpack.c.l.b16 %v117
  %v425 = vunpack.c.h.b16 %v117
  %v426 = vunpack.c.l.b16 %v118
  %v427 = vunpack.c.h.b16 %v118
  %v428 = vunpack.c.l.b16 %v119
  %v429 = vunpack.c.h.b16 %v119
  %v430 = vunpack.c.l.b16 %v120
  %v431 = vunpack.c.h.b16 %v120
  %v432 = vunpack.c.l.b16 %v121
  %v433 = vunpack.c.h.b16 %v121
  %v434 = vunpack.c.l.b16 %v122
  %v435 = vunpack.c.h.b16 %v122
  %v436 = vunpack.c.l.b16 %v123
  %v437 = vunpack.c.h.b16 %v123
  %v438 = vunpack.c.l.b16 %v124
  %v439 = vunpack.c.h.b16 %v124
  %v440 = vunpack.c.l.b16 %v125
  %v441 = vunpack.c.h.b16 %v125
  %v442 = vunpack.c.l.b16 %v126
  %v443 = vunpack.c.h.b16 %v126
  %v444 = vunpack.c.l.b16 %v127
  %v445 = vunpack.c.h.b16 %v127
  %v446 = vunpack.c.l.b16 %v128
  %v447 = vunpack.c.h.b16 %v128
  %v448 = vunpack.c.l.b16 %v129
  %v449 = vunpack.c.h.b16 %v129
  %v450 = vunpack.c.l.b16 %v130
  %v451 = vunpack.c.h.b16 %v130
  %v452 = vunpack.c.l.b16 %v131
  %v453 = vunpack.c.h.b16 %v131
  %v454 = vunpack.c.l.b16 %v132
  %v455 = vunpack.c.h.b16 %v132
  %v456 = vunpack.c.l.b16 %v133
  %v457 = vunpack.c.h.b16 %v133
  %v458 = vunpack.c.l.b16 %v134
  %v459 = vunpack.c.h.b16 %v134
  %v460 = vunpack.c.l.b16 %v135
  %v461 = vunpack.c.h.b16 %v135
  %v462 = vunpack.c.l.b16 %v136
  %v463 = vunpack.c.h.b16 %v136
  %v464 = vunpack.c.l.b16 %v137
  %v465 = vunpack.c.h.b16 %v137
  %v466 = vunpack.c.l.b16 %v138
  %v467 = vunpack.c.h.b16 %v138
  %v468 = vunpack.c.l.b16 %v139
  %v469 = vunpack.c.h.b16 %v139
  %v470 = vpack.c.b16 %v276, %v274
  %v471 = vpack.c.b16 %v277, %v275
  %v472 = vpack.c.b16 %v280, %v278
  %v473 = vpack.c.b16 %v281, %v279
  %v474 = vpack.c.b16 %v284, %v282
  %v475 = vpack.c.b16 %v285, %v283
  %v476 = vpack.c.b16 %v288, %v286
  %v477 = vpack.c.b16 %v289, %v287
  %v478 = vpack.c.b16 %v292, %v290
  %v479 = vpack.c.b16 %v293, %v291
  %v480 = vpack.c.b16 %v296, %v294
  %v481 = vpack.c.b16 %v297, %v295
  %v482 = vpack.c.b16 %v300, %v298
  %v483 = vpack.c.b16 %v301, %v299
  %v484 = vpack.c.b16 %v304, %v302
  %v485 = vpack.c.b16 %v305, %v303
  %v486 = vpack.c.b16 %v308, %v306
  %v487 = vpack.c.b16 %v309, %v307
  %v488 = vpack.c.b16 %v312, %v310
  %v489 = vpack.c.b16 %v313, %v311
  %v490 = vpack.c.b16 %v316, %v314
  %v491 = vpack.c.b16 %v317, %v315
  %v492 = vpack.c.b16 %v320, %v318
  %v493 = vpack.c.b16 %v321, %v319
  %v494 = vpack.c.b16 %v324, %v322
  %v495 = vpack.c.b16 %v325, %v323
  %v496 = vpack.c.b16 %v328, %v326
  %v497 = vpack.c.b16 %v329, %v327
  %v498 = vpack.c.b16 %v332, %v330
  %v499 = vpack.c.b16 %v333, %v331
  %v500 = vpack.c.b16 %v336, %v334
  %v501 = vpack.c.b16 %v337, %v335
  %v502 = vpack.c.b16 %v340, %v338
  %v503 = vpack.c.b16 %v341, %v339
  %v504 = vpack.c.b16 %v344, %v342
  %v505 = vpack.c.b16 %v345, %v343
  %v506 = vpack.c.b16 %v348, %v346
  %v507 = vpack.c.b16 %v349, %v347
  %v508 = vpack.c.b16 %v352, %v350
  %v509 = vpack.c.b16 %v353, %v351
  %v510 = vpack.c.b16 %v356, %v354
  %v511 = vpack.c.b16 %v357, %v355
  %v512 = vpack.c.b16 %v360, %v358
  %v513 = vpack.c.b16 %v361, %v359
  %v514 = vpack.c.b16 %v364, %v362
  %v515 = vpack.c.b16 %v365, %v363
  %v516 = vpack.c.b16 %v368, %v366
  %v517 = vpack.c.b16 %v369, %v367
  %v518 = vpack.c.b16 %v372, %v370
  %v519 = vpack.c.b16 %v373, %v371
  %v520 = vpack.c.b16 %v376, %v374
  %v521 = vpack.c.b16 %v377, %v375
  %v522 = vpack.c.b16 %v380, %v378
  %v523 = vpack.c.b16 %v381, %v379
  %v524 = vpack.c.b16 %v384, %v382
  %v525 = vpack.c.b16 %v385, %v383
  %v526 = vpack.c.b16 %v388, %v386
  %v527 = vpack.c.b16 %v389, %v387
  %v528 = vpack.c.b16 %v392, %v390
  %v529 = vpack.c.b16 %v393, %v391
  %v530 = vpack.c.b16 %v396, %v394
  %v531 = vpack.c.b16 %v397, %v395
  %v532 = vpack.c.b16 %v400, %v398
  %v533 = vpack.c.b16 %v401, %v399
  %v534 = vpack.c.b16 %v404, %v402
  %v535 = vpack.c.b16 %v405, %v403
  %v536 = vpack.c.b16 %v408, %v406
  %v537 = vpack.c.b16 %v409, %v407
  %v538 = vpack.c.b16 %v412, %v410
  %v539 = vpack.c.b16 %v413, %v411
  %v540 = vpack.c.b16 %v416, %v414
  %v541 = vpack.c.b16 %v417, %v415
  %v542 = vpack.c.b16 %v420, %v418
  %v543 = vpack.c.b16 %v421, %v419
  %v544 = vpack.c.b16 %v424, %v422
  %v545 = vpack.c.b16 %v425, %v423
  %v546 = vpack.c.b16 %v428, %v426
  %v547 = vpack.c.b16 %v429, %v427
  %v548 = vpack.c.b16 %v432, %v430
  %v549 = vpack.c.b16 %v433, %v431
  %v550 = vpack.c.b16 %v436, %v434
  %v551 = vpack.c.b16 %v437, %v435
  %v552 = vpack.c.b16 %v440, %v438
  %v553 = vpack.c.b16 %v441, %v439
  %v554 = vpack.c.b16 %v444, %v442
  %v555 = vpack.c.b16 %v445, %v443
  %v556 = vpack.c.b16 %v448, %v446
  %v557 = vpack.c.b16 %v449, %v447
  %v558 = vpack.c.b16 %v452, %v450
  %v559 = vpack.c.b16 %v453, %v451
  %v560 = vpack.c.b16 %v456, %v454
  %v561 = vpack.c.b16 %v457, %v455
  %v562 = vpack.c.b16 %v460, %v458
  %v563 = vpack.c.b16 %v461, %v459
  %v564 = vpack.c.b16 %v464, %v462
  %v565 = vpack.c.b16 %v465, %v463
  %v566 = vpack.c.b16 %v468, %v466
  %v567 = vpack.c.b16 %v469, %v467
  %vm666 = vcmask 130048
  %v668 = vsel %vm666, %v169, 0
  %670 = vmatprep.subr.bf16.mxu0 %v485
  %671 = vmatpush1.bf16.msra.mxu0 %v484
  %672 = vmatprep.subr.bf16.mxu0 %v483
  %673 = vmatpush1.bf16.msra.mxu0 %v482
  %674 = vmatprep.subr.bf16.mxu0 %v481
  %675 = vmatpush1.bf16.msra.mxu0 %v480
  %676 = vmatprep.subr.bf16.mxu0 %v479
  %677 = vmatpush1.bf16.msra.mxu0 %v478
  %678 = vmatprep.subr.bf16.mxu0 %v477
  %679 = vmatpush1.bf16.msra.mxu0 %v476
  %680 = vmatprep.subr.bf16.mxu0 %v475
  %681 = vmatpush1.bf16.msra.mxu0 %v474
  %682 = vmatprep.subr.bf16.mxu0 %v473
  %683 = vmatpush1.bf16.msra.mxu0 %v472
  %684 = vmatprep.subr.bf16.mxu0 %v471
  %685 = vmatpush1.bf16.msra.mxu0 %v470
  %686 = vmatprep.subr.bf16.mxu0 %v501
  %687 = vmatpush2.bf16.msra.mxu0 %v500
  %688 = vmatprep.subr.bf16.mxu0 %v499
  %689 = vmatpush2.bf16.msra.mxu0 %v498
  %690 = vmatprep.subr.bf16.mxu0 %v497
  %691 = vmatpush2.bf16.msra.mxu0 %v496
  %692 = vmatprep.subr.bf16.mxu0 %v495
  %693 = vmatpush2.bf16.msra.mxu0 %v494
  %694 = vmatprep.subr.bf16.mxu0 %v493
  %695 = vmatpush2.bf16.msra.mxu0 %v492
  %696 = vmatprep.subr.bf16.mxu0 %v491
  %697 = vmatpush2.bf16.msra.mxu0 %v490
  %698 = vmatprep.subr.bf16.mxu0 %v489
  %699 = vmatpush2.bf16.msra.mxu0 %v488
  %700 = vmatprep.subr.bf16.mxu0 %v487
  %701 = vmatpush2.bf16.msra.mxu0 %v486
  %702 = vmatprep.mubr.bf16.mxu0 %v164
  %703 = vmatmul.mubr.bf16.gmra.mxu0 %v163
  %v704 = vpop.f32.mrf.mxu0
  %v705 = vadd.f32 %v145, %v704
  %v706 = vpop.f32.mrf.mxu0
  %v707 = vadd.f32 %v149, %v706
  %v708 = vpop.f32.mrf.mxu0
  %v709 = vpop.f32.mrf.mxu0
  %710 = vdwg.mxu0
  %711 = vmatprep.subr.bf16.mxu0 %v517
  %712 = vmatpush1.bf16.msra.mxu0 %v516
  %713 = vmatprep.subr.bf16.mxu0 %v515
  %714 = vmatpush1.bf16.msra.mxu0 %v514
  %715 = vmatprep.subr.bf16.mxu0 %v513
  %716 = vmatpush1.bf16.msra.mxu0 %v512
  %717 = vmatprep.subr.bf16.mxu0 %v511
  %718 = vmatpush1.bf16.msra.mxu0 %v510
  %719 = vmatprep.subr.bf16.mxu0 %v509
  %720 = vmatpush1.bf16.msra.mxu0 %v508
  %721 = vmatprep.subr.bf16.mxu0 %v507
  %722 = vmatpush1.bf16.msra.mxu0 %v506
  %723 = vmatprep.subr.bf16.mxu0 %v505
  %724 = vmatpush1.bf16.msra.mxu0 %v504
  %725 = vmatprep.subr.bf16.mxu0 %v503
  %726 = vmatpush1.bf16.msra.mxu0 %v502
  %727 = vmatprep.subr.bf16.mxu0 %v533
  %728 = vmatpush2.bf16.msra.mxu0 %v532
  %729 = vmatprep.subr.bf16.mxu0 %v531
  %730 = vmatpush2.bf16.msra.mxu0 %v530
  %731 = vmatprep.subr.bf16.mxu0 %v529
  %732 = vmatpush2.bf16.msra.mxu0 %v528
  %733 = vmatprep.subr.bf16.mxu0 %v527
  %734 = vmatpush2.bf16.msra.mxu0 %v526
  %735 = vmatprep.subr.bf16.mxu0 %v525
  %736 = vmatpush2.bf16.msra.mxu0 %v524
  %737 = vmatprep.subr.bf16.mxu0 %v523
  %738 = vmatpush2.bf16.msra.mxu0 %v522
  %739 = vmatprep.subr.bf16.mxu0 %v521
  %740 = vmatpush2.bf16.msra.mxu0 %v520
  %741 = vmatprep.subr.bf16.mxu0 %v519
  %742 = vmatpush2.bf16.msra.mxu0 %v518
  %743 = vmatprep.mubr.bf16.mxu0 %v166
  %744 = vmatmul.mubr.bf16.gmra.mxu0 %v165
  %v745 = vpop.f32.mrf.mxu0
  %v746 = vadd.f32 %v705, %v745
  %v747 = vpop.f32.mrf.mxu0
  %v748 = vadd.f32 %v707, %v747
  %v749 = vpop.f32.mrf.mxu0
  %v750 = vpop.f32.mrf.mxu0
  %751 = vdwg.mxu0
  %752 = vmatprep.subr.bf16.mxu0 %v549
  %753 = vmatpush1.bf16.msra.mxu0 %v548
  %754 = vmatprep.subr.bf16.mxu0 %v547
  %755 = vmatpush1.bf16.msra.mxu0 %v546
  %756 = vmatprep.subr.bf16.mxu0 %v545
  %757 = vmatpush1.bf16.msra.mxu0 %v544
  %758 = vmatprep.subr.bf16.mxu0 %v543
  %759 = vmatpush1.bf16.msra.mxu0 %v542
  %760 = vmatprep.subr.bf16.mxu0 %v541
  %761 = vmatpush1.bf16.msra.mxu0 %v540
  %762 = vmatprep.subr.bf16.mxu0 %v539
  %763 = vmatpush1.bf16.msra.mxu0 %v538
  %764 = vmatprep.subr.bf16.mxu0 %v537
  %765 = vmatpush1.bf16.msra.mxu0 %v536
  %766 = vmatprep.subr.bf16.mxu0 %v535
  %767 = vmatpush1.bf16.msra.mxu0 %v534
  %768 = vmatprep.subr.bf16.mxu0 %v565
  %769 = vmatpush2.bf16.msra.mxu0 %v564
  %770 = vmatprep.subr.bf16.mxu0 %v563
  %771 = vmatpush2.bf16.msra.mxu0 %v562
  %772 = vmatprep.subr.bf16.mxu0 %v561
  %773 = vmatpush2.bf16.msra.mxu0 %v560
  %774 = vmatprep.subr.bf16.mxu0 %v559
  %775 = vmatpush2.bf16.msra.mxu0 %v558
  %776 = vmatprep.subr.bf16.mxu0 %v557
  %777 = vmatpush2.bf16.msra.mxu0 %v556
  %778 = vmatprep.subr.bf16.mxu0 %v555
  %779 = vmatpush2.bf16.msra.mxu0 %v554
  %780 = vmatprep.subr.bf16.mxu0 %v553
  %781 = vmatpush2.bf16.msra.mxu0 %v552
  %782 = vmatprep.subr.bf16.mxu0 %v551
  %783 = vmatpush2.bf16.msra.mxu0 %v550
  %784 = vmatprep.mubr.bf16.mxu0 %v168
  %785 = vmatmul.mubr.bf16.gmra.mxu0 %v167
  %v786 = vpop.f32.mrf.mxu0
  %v787 = vadd.f32 %v746, %v786
  %v788 = vpop.f32.mrf.mxu0
  %v789 = vadd.f32 %v748, %v788
  %v790 = vpop.f32.mrf.mxu0
  %v791 = vpop.f32.mrf.mxu0
  %792 = vdwg.mxu0
  %793 = vmatprep.subr.bf16.mxu0 0
  %794 = vmatpush1.bf16.msra.mxu0 0
  %795 = vmatprep.subr.bf16.mxu0 0
  %796 = vmatpush1.bf16.msra.mxu0 0
  %797 = vmatprep.subr.bf16.mxu0 0
  %798 = vmatpush1.bf16.msra.mxu0 0
  %799 = vmatprep.subr.bf16.mxu0 0
  %800 = vmatpush1.bf16.msra.mxu0 0
  %801 = vmatprep.subr.bf16.mxu0 0
  %802 = vmatpush1.bf16.msra.mxu0 0
  %803 = vmatprep.subr.bf16.mxu0 0
  %804 = vmatpush1.bf16.msra.mxu0 0
  %805 = vmatprep.subr.bf16.mxu0 0
  %806 = vmatpush1.bf16.msra.mxu0 0
  %807 = vmatprep.subr.bf16.mxu0 %v567
  %808 = vmatpush1.bf16.msra.mxu0 %v566
  %809 = vmatprep.subr.bf16.mxu0 0
  %810 = vmatpush2.bf16.msra.mxu0 0
  %811 = vmatprep.subr.bf16.mxu0 0
  %812 = vmatpush2.bf16.msra.mxu0 0
  %813 = vmatprep.subr.bf16.mxu0 0
  %814 = vmatpush2.bf16.msra.mxu0 0
  %815 = vmatprep.subr.bf16.mxu0 0
  %816 = vmatpush2.bf16.msra.mxu0 0
  %817 = vmatprep.subr.bf16.mxu0 0
  %818 = vmatpush2.bf16.msra.mxu0 0
  %819 = vmatprep.subr.bf16.mxu0 0
  %820 = vmatpush2.bf16.msra.mxu0 0
  %821 = vmatprep.subr.bf16.mxu0 0
  %822 = vmatpush2.bf16.msra.mxu0 0
  %823 = vmatprep.subr.bf16.mxu0 0
  %824 = vmatpush2.bf16.msra.mxu0 0
  %825 = vmatprep.mubr.bf16.mxu0 0
  %826 = vmatmul.mubr.bf16.gmra.mxu0 %v668
  %v827 = vpop.f32.mrf.mxu0
  %v828 = vadd.f32 %v787, %v827
  %v829 = vpop.f32.mrf.mxu0
  %v830 = vadd.f32 %v789, %v829
  %v831 = vpop.f32.mrf.mxu0
  %v832 = vpop.f32.mrf.mxu0
  %833 = vdwg.mxu0
  %v834 = vtanh.pop %v828
  %v835 = vtanh.pop %v830
  %v836 = vld [vmem:[%s4] sm:$0xf]
  %v837 = vld [vmem:[%s4 + $0x4] sm:$0xf]
  %v838 = vld [vmem:[%s4 + $0x8] sm:$0xf]
  %v839 = vld [vmem:[%s4 + $0xc] sm:$0xf]
  %v840 = vld [vmem:[%s4 + $0x10] sm:$0xf]
  %v841 = vld [vmem:[%s4 + $0x14] sm:$0xf]
  %v842 = vld [vmem:[%s4 + $0x18] sm:$0xf]
  %v843 = vld [vmem:[%s4 + $0x1c] sm:$0xf]
  %v844 = vld [vmem:[%s4 + $0x20] sm:$0xf]
  %v845 = vld [vmem:[%s4 + $0x24] sm:$0xf]
  %v846 = vld [vmem:[%s4 + $0x28] sm:$0xf]
  %v847 = vld [vmem:[%s4 + $0x2c] sm:$0xf]
  %v848 = vld [vmem:[%s4 + $0x30] sm:$0xf]
  %v849 = vld [vmem:[%s4 + $0x34] sm:$0xf]
  %v850 = vld [vmem:[%s4 + $0x38] sm:$0xf]
  %v851 = vld [vmem:[%s4 + $0x3c] sm:$0xf]
  %v852 = vld [vmem:[%s4 + $0x40] sm:$0xf]
  %v853 = vld [vmem:[%s4 + $0x44] sm:$0xf]
  %v854 = vld [vmem:[%s4 + $0x48] sm:$0xf]
  %v855 = vld [vmem:[%s4 + $0x4c] sm:$0xf]
  %v856 = vld [vmem:[%s4 + $0x50] sm:$0xf]
  %v857 = vld [vmem:[%s4 + $0x54] sm:$0xf]
  %v858 = vld [vmem:[%s4 + $0x58] sm:$0xf]
  %v859 = vld [vmem:[%s4 + $0x5c] sm:$0xf]
  %v860 = vld [vmem:[%s4 + $0x60] sm:$0xf]
  %v861 = vld [vmem:[%s4 + $0x64] sm:$0xf]
  %v862 = vld [vmem:[%s4 + $0x68] sm:$0xf]
  %v863 = vld [vmem:[%s4 + $0x6c] sm:$0xf]
  %v864 = vld [vmem:[%s4 + $0x70] sm:$0xf]
  %v865 = vld [vmem:[%s4 + $0x74] sm:$0xf]
  %v866 = vld [vmem:[%s4 + $0x78] sm:$0xf]
  %v867 = vld [vmem:[%s4 + $0x7c] sm:$0xf]
  %v868 = vpack.c.bf16 %v834, %v834
  %v869 = vpack.c.bf16 %v835, %v835
  %v870 = vld [vmem:[%s2 + $0x1] ss:$0 sm:$0xff]
  %v903 = vunpack.c.l.b16 %v836
  %v904 = vunpack.c.l.b16 %v837
  %v905 = vunpack.c.l.b16 %v838
  %v906 = vunpack.c.l.b16 %v839
  %v907 = vunpack.c.l.b16 %v840
  %v908 = vunpack.c.l.b16 %v841
  %v909 = vunpack.c.l.b16 %v842
  %v910 = vunpack.c.l.b16 %v843
  %v911 = vunpack.c.l.b16 %v844
  %v912 = vunpack.c.l.b16 %v845
  %v913 = vunpack.c.l.b16 %v846
  %v914 = vunpack.c.l.b16 %v847
  %v915 = vunpack.c.l.b16 %v848
  %v916 = vunpack.c.l.b16 %v849
  %v917 = vunpack.c.l.b16 %v850
  %v918 = vunpack.c.l.b16 %v851
  %v919 = vunpack.c.l.b16 %v852
  %v920 = vunpack.c.l.b16 %v853
  %v921 = vunpack.c.l.b16 %v854
  %v922 = vunpack.c.l.b16 %v855
  %v923 = vunpack.c.l.b16 %v856
  %v924 = vunpack.c.l.b16 %v857
  %v925 = vunpack.c.l.b16 %v858
  %v926 = vunpack.c.l.b16 %v859
  %v927 = vunpack.c.l.b16 %v860
  %v928 = vunpack.c.l.b16 %v861
  %v929 = vunpack.c.l.b16 %v862
  %v930 = vunpack.c.l.b16 %v863
  %v931 = vunpack.c.l.b16 %v864
  %v932 = vunpack.c.l.b16 %v865
  %v933 = vunpack.c.l.b16 %v866
  %v934 = vunpack.c.l.b16 %v867
  %v935 = vpack.c.b16 %v904, %v903
  %v936 = vpack.c.b16 %v906, %v905
  %v937 = vpack.c.b16 %v908, %v907
  %v938 = vpack.c.b16 %v910, %v909
  %v939 = vpack.c.b16 %v912, %v911
  %v940 = vpack.c.b16 %v914, %v913
  %v941 = vpack.c.b16 %v916, %v915
  %v942 = vpack.c.b16 %v918, %v917
  %v943 = vpack.c.b16 %v920, %v919
  %v944 = vpack.c.b16 %v922, %v921
  %v945 = vpack.c.b16 %v924, %v923
  %v946 = vpack.c.b16 %v926, %v925
  %v947 = vpack.c.b16 %v928, %v927
  %v948 = vpack.c.b16 %v930, %v929
  %v949 = vpack.c.b16 %v932, %v931
  %v950 = vpack.c.b16 %v934, %v933
  %967 = vmatprep.subr.bf16.mxu0 0
  %968 = vmatpush1.bf16.msra.mxu0 %v942
  %969 = vmatprep.subr.bf16.mxu0 0
  %970 = vmatpush1.bf16.msra.mxu0 %v941
  %971 = vmatprep.subr.bf16.mxu0 0
  %972 = vmatpush1.bf16.msra.mxu0 %v940
  %973 = vmatprep.subr.bf16.mxu0 0
  %974 = vmatpush1.bf16.msra.mxu0 %v939
  %975 = vmatprep.subr.bf16.mxu0 0
  %976 = vmatpush1.bf16.msra.mxu0 %v938
  %977 = vmatprep.subr.bf16.mxu0 0
  %978 = vmatpush1.bf16.msra.mxu0 %v937
  %979 = vmatprep.subr.bf16.mxu0 0
  %980 = vmatpush1.bf16.msra.mxu0 %v936
  %981 = vmatprep.subr.bf16.mxu0 0
  %982 = vmatpush1.bf16.msra.mxu0 %v935
  %983 = vmatprep.subr.bf16.mxu0 0
  %984 = vmatpush2.bf16.msra.mxu0 %v950
  %985 = vmatprep.subr.bf16.mxu0 0
  %986 = vmatpush2.bf16.msra.mxu0 %v949
  %987 = vmatprep.subr.bf16.mxu0 0
  %988 = vmatpush2.bf16.msra.mxu0 %v948
  %989 = vmatprep.subr.bf16.mxu0 0
  %990 = vmatpush2.bf16.msra.mxu0 %v947
  %991 = vmatprep.subr.bf16.mxu0 0
  %992 = vmatpush2.bf16.msra.mxu0 %v946
  %993 = vmatprep.subr.bf16.mxu0 0
  %994 = vmatpush2.bf16.msra.mxu0 %v945
  %995 = vmatprep.subr.bf16.mxu0 0
  %996 = vmatpush2.bf16.msra.mxu0 %v944
  %997 = vmatprep.subr.bf16.mxu0 0
  %998 = vmatpush2.bf16.msra.mxu0 %v943
  %999 = vmatprep.mubr.bf16.mxu0 %v869
  %1000 = vmatmul.mubr.bf16.gmra.mxu0 %v868
  %v1001 = vpop.f32.mrf.mxu0
  %v1002 = vadd.f32 %v870, %v1001
  %v1003 = vpop.f32.mrf.mxu0
  %v1004 = vpop.f32.mrf.mxu0
  %v1005 = vpop.f32.mrf.mxu0
  %1006 = vdwg.mxu0
  %v1007 = vtanh.pop %v1002
  %v1008 = vld [vmem:[%s5] sm:$0xff]
  %v1009 = vld [vmem:[%s5 + $0x8] sm:$0xff]
  %v1010 = vld [vmem:[%s5 + $0x10] sm:$0xff]
  %v1011 = vld [vmem:[%s5 + $0x18] sm:$0xff]
  %v1012 = vld [vmem:[%s5 + $0x20] sm:$0xff]
  %v1013 = vld [vmem:[%s5 + $0x28] sm:$0xff]
  %v1014 = vld [vmem:[%s5 + $0x30] sm:$0xff]
  %v1015 = vld [vmem:[%s5 + $0x38] sm:$0xff]
  %v1016 = vld [vmem:[%s5 + $0x40] sm:$0xff]
  %v1017 = vld [vmem:[%s5 + $0x48] sm:$0xff]
  %v1018 = vld [vmem:[%s5 + $0x50] sm:$0xff]
  %v1019 = vld [vmem:[%s5 + $0x58] sm:$0xff]
  %v1020 = vld [vmem:[%s5 + $0x60] sm:$0xff]
  %v1021 = vld [vmem:[%s5 + $0x68] sm:$0xff]
  %v1022 = vld [vmem:[%s5 + $0x70] sm:$0xff]
  %v1023 = vld [vmem:[%s5 + $0x78] sm:$0xff]
  %v1024 = vpack.c.bf16 %v1007, %v1007
  %s1025 = scalar_lea.vmem %s2, 2
  %v1026 = vld [vmem:[%s1025] ss:$8 sm:$0x3]
  %v1028 = vlaneseq
  %v1029 = vshrl.u32 %v1028, 7
  %v1030 = vsub.s32 0, %v1029
  %v1031 = vrot.slane %v1026, %v1030
  %v1032 = vlaneseq
  %v1033 = vshrl.u32 %v1032, 7
  %v1034 = vsub.s32 1, %v1033
  %v1035 = vrot.slane %v1026, %v1034
  %v1054 = vunpack.c.l.b16 %v1008
  %v1055 = vunpack.c.h.b16 %v1008
  %v1056 = vunpack.c.l.b16 %v1009
  %v1057 = vunpack.c.h.b16 %v1009
  %v1058 = vunpack.c.l.b16 %v1010
  %v1059 = vunpack.c.h.b16 %v1010
  %v1060 = vunpack.c.l.b16 %v1011
  %v1061 = vunpack.c.h.b16 %v1011
  %v1062 = vunpack.c.l.b16 %v1012
  %v1063 = vunpack.c.h.b16 %v1012
  %v1064 = vunpack.c.l.b16 %v1013
  %v1065 = vunpack.c.h.b16 %v1013
  %v1066 = vunpack.c.l.b16 %v1014
  %v1067 = vunpack.c.h.b16 %v1014
  %v1068 = vunpack.c.l.b16 %v1015
  %v1069 = vunpack.c.h.b16 %v1015
  %v1070 = vunpack.c.l.b16 %v1016
  %v1071 = vunpack.c.h.b16 %v1016
  %v1072 = vunpack.c.l.b16 %v1017
  %v1073 = vunpack.c.h.b16 %v1017
  %v1074 = vunpack.c.l.b16 %v1018
  %v1075 = vunpack.c.h.b16 %v1018
  %v1076 = vunpack.c.l.b16 %v1019
  %v1077 = vunpack.c.h.b16 %v1019
  %v1078 = vunpack.c.l.b16 %v1020
  %v1079 = vunpack.c.h.b16 %v1020
  %v1080 = vunpack.c.l.b16 %v1021
  %v1081 = vunpack.c.h.b16 %v1021
  %v1082 = vunpack.c.l.b16 %v1022
  %v1083 = vunpack.c.h.b16 %v1022
  %v1084 = vunpack.c.l.b16 %v1023
  %v1085 = vunpack.c.h.b16 %v1023
  %v1086 = vpack.c.b16 %v1056, %v1054
  %v1087 = vpack.c.b16 %v1057, %v1055
  %v1088 = vpack.c.b16 %v1060, %v1058
  %v1089 = vpack.c.b16 %v1061, %v1059
  %v1090 = vpack.c.b16 %v1064, %v1062
  %v1091 = vpack.c.b16 %v1065, %v1063
  %v1092 = vpack.c.b16 %v1068, %v1066
  %v1093 = vpack.c.b16 %v1069, %v1067
  %v1094 = vpack.c.b16 %v1072, %v1070
  %v1095 = vpack.c.b16 %v1073, %v1071
  %v1096 = vpack.c.b16 %v1076, %v1074
  %v1097 = vpack.c.b16 %v1077, %v1075
  %v1098 = vpack.c.b16 %v1080, %v1078
  %v1099 = vpack.c.b16 %v1081, %v1079
  %v1100 = vpack.c.b16 %v1084, %v1082
  %v1101 = vpack.c.b16 %v1085, %v1083
  %1118 = vmatprep.subr.bf16.mxu0 %v1101
  %1119 = vmatpush1.bf16.msra.mxu0 %v1100
  %1120 = vmatprep.subr.bf16.mxu0 %v1099
  %1121 = vmatpush1.bf16.msra.mxu0 %v1098
  %1122 = vmatprep.subr.bf16.mxu0 %v1097
  %1123 = vmatpush1.bf16.msra.mxu0 %v1096
  %1124 = vmatprep.subr.bf16.mxu0 %v1095
  %1125 = vmatpush1.bf16.msra.mxu0 %v1094
  %1126 = vmatprep.subr.bf16.mxu0 %v1093
  %1127 = vmatpush1.bf16.msra.mxu0 %v1092
  %1128 = vmatprep.subr.bf16.mxu0 %v1091
  %1129 = vmatpush1.bf16.msra.mxu0 %v1090
  %1130 = vmatprep.subr.bf16.mxu0 %v1089
  %1131 = vmatpush1.bf16.msra.mxu0 %v1088
  %1132 = vmatprep.subr.bf16.mxu0 %v1087
  %1133 = vmatpush1.bf16.msra.mxu0 %v1086
  %1134 = vmatprep.subr.bf16.mxu0 0
  %1135 = vmatpush2.bf16.msra.mxu0 0
  %1136 = vmatprep.subr.bf16.mxu0 0
  %1137 = vmatpush2.bf16.msra.mxu0 0
  %1138 = vmatprep.subr.bf16.mxu0 0
  %1139 = vmatpush2.bf16.msra.mxu0 0
  %1140 = vmatprep.subr.bf16.mxu0 0
  %1141 = vmatpush2.bf16.msra.mxu0 0
  %1142 = vmatprep.subr.bf16.mxu0 0
  %1143 = vmatpush2.bf16.msra.mxu0 0
  %1144 = vmatprep.subr.bf16.mxu0 0
  %1145 = vmatpush2.bf16.msra.mxu0 0
  %1146 = vmatprep.subr.bf16.mxu0 0
  %1147 = vmatpush2.bf16.msra.mxu0 0
  %1148 = vmatprep.subr.bf16.mxu0 0
  %1149 = vmatpush2.bf16.msra.mxu0 0
  %1150 = vmatprep.mubr.bf16.mxu0 0
  %1151 = vmatmul.mubr.bf16.gmra.mxu0 %v1024
  %v1152 = vpop.f32.mrf.mxu0
  %v1153 = vadd.f32 %v1031, %v1152
  %v1154 = vpop.f32.mrf.mxu0
  %v1155 = vadd.f32 %v1035, %v1154
  %v1156 = vpop.f32.mrf.mxu0
  %v1157 = vpop.f32.mrf.mxu0
  %1158 = vdwg.mxu0
  %v1159 = vtanh.pop %v1153
  %v1160 = vtanh.pop %v1155
  %v1161 = vld [vmem:[%s6] sm:$0xff]
  %v1162 = vld [vmem:[%s6 + $0x8] sm:$0xff]
  %v1163 = vld [vmem:[%s6 + $0x10] sm:$0xff]
  %v1164 = vld [vmem:[%s6 + $0x18] sm:$0xff]
  %v1165 = vld [vmem:[%s6 + $0x20] sm:$0xff]
  %v1166 = vld [vmem:[%s6 + $0x28] sm:$0xff]
  %v1167 = vld [vmem:[%s6 + $0x30] sm:$0xff]
  %v1168 = vld [vmem:[%s6 + $0x38] sm:$0xff]
  %v1169 = vld [vmem:[%s6 + $0x40] sm:$0xff]
  %v1170 = vld [vmem:[%s6 + $0x48] sm:$0xff]
  %v1171 = vld [vmem:[%s6 + $0x50] sm:$0xff]
  %v1172 = vld [vmem:[%s6 + $0x58] sm:$0xff]
  %v1173 = vld [vmem:[%s6 + $0x60] sm:$0xff]
  %v1174 = vld [vmem:[%s6 + $0x68] sm:$0xff]
  %v1175 = vld [vmem:[%s6 + $0x70] sm:$0xff]
  %v1176 = vld [vmem:[%s6 + $0x78] sm:$0xff]
  %v1177 = vld [vmem:[%s6 + $0x80] sm:$0xff]
  %v1178 = vld [vmem:[%s6 + $0x88] sm:$0xff]
  %v1179 = vld [vmem:[%s6 + $0x90] sm:$0xff]
  %v1180 = vld [vmem:[%s6 + $0x98] sm:$0xff]
  %v1181 = vld [vmem:[%s6 + $0xa0] sm:$0xff]
  %v1182 = vld [vmem:[%s6 + $0xa8] sm:$0xff]
  %v1183 = vld [vmem:[%s6 + $0xb0] sm:$0xff]
  %v1184 = vld [vmem:[%s6 + $0xb8] sm:$0xff]
  %v1185 = vld [vmem:[%s6 + $0xc0] sm:$0xff]
  %v1186 = vld [vmem:[%s6 + $0xc8] sm:$0xff]
  %v1187 = vld [vmem:[%s6 + $0xd0] sm:$0xff]
  %v1188 = vld [vmem:[%s6 + $0xd8] sm:$0xff]
  %v1189 = vld [vmem:[%s6 + $0xe0] sm:$0xff]
  %v1190 = vld [vmem:[%s6 + $0xe8] sm:$0xff]
  %v1191 = vld [vmem:[%s6 + $0xf0] sm:$0xff]
  %v1192 = vld [vmem:[%s6 + $0xf8] sm:$0xff]
  %v1193 = vpack.c.bf16 %v1159, %v1159
  %v1194 = vpack.c.bf16 %v1160, %v1160
  %s1195 = scalar_lea.vmem %s2, 3
  %v1196 = vld [vmem:[%s1195] ss:$8 sm:$0x3]
  %v1198 = vlaneseq
  %v1199 = vshrl.u32 %v1198, 7
  %v1200 = vsub.s32 0, %v1199
  %v1201 = vrot.slane %v1196, %v1200
  %v1202 = vlaneseq
  %v1203 = vshrl.u32 %v1202, 7
  %v1204 = vsub.s32 1, %v1203
  %v1205 = vrot.slane %v1196, %v1204
  %v1240 = vunpack.c.l.b16 %v1161
  %v1241 = vunpack.c.h.b16 %v1161
  %v1242 = vunpack.c.l.b16 %v1162
  %v1243 = vunpack.c.h.b16 %v1162
  %v1244 = vunpack.c.l.b16 %v1163
  %v1245 = vunpack.c.h.b16 %v1163
  %v1246 = vunpack.c.l.b16 %v1164
  %v1247 = vunpack.c.h.b16 %v1164
  %v1248 = vunpack.c.l.b16 %v1165
  %v1249 = vunpack.c.h.b16 %v1165
  %v1250 = vunpack.c.l.b16 %v1166
  %v1251 = vunpack.c.h.b16 %v1166
  %v1252 = vunpack.c.l.b16 %v1167
  %v1253 = vunpack.c.h.b16 %v1167
  %v1254 = vunpack.c.l.b16 %v1168
  %v1255 = vunpack.c.h.b16 %v1168
  %v1256 = vunpack.c.l.b16 %v1169
  %v1257 = vunpack.c.h.b16 %v1169
  %v1258 = vunpack.c.l.b16 %v1170
  %v1259 = vunpack.c.h.b16 %v1170
  %v1260 = vunpack.c.l.b16 %v1171
  %v1261 = vunpack.c.h.b16 %v1171
  %v1262 = vunpack.c.l.b16 %v1172
  %v1263 = vunpack.c.h.b16 %v1172
  %v1264 = vunpack.c.l.b16 %v1173
  %v1265 = vunpack.c.h.b16 %v1173
  %v1266 = vunpack.c.l.b16 %v1174
  %v1267 = vunpack.c.h.b16 %v1174
  %v1268 = vunpack.c.l.b16 %v1175
  %v1269 = vunpack.c.h.b16 %v1175
  %v1270 = vunpack.c.l.b16 %v1176
  %v1271 = vunpack.c.h.b16 %v1176
  %v1272 = vunpack.c.l.b16 %v1177
  %v1273 = vunpack.c.h.b16 %v1177
  %v1274 = vunpack.c.l.b16 %v1178
  %v1275 = vunpack.c.h.b16 %v1178
  %v1276 = vunpack.c.l.b16 %v1179
  %v1277 = vunpack.c.h.b16 %v1179
  %v1278 = vunpack.c.l.b16 %v1180
  %v1279 = vunpack.c.h.b16 %v1180
  %v1280 = vunpack.c.l.b16 %v1181
  %v1281 = vunpack.c.h.b16 %v1181
  %v1282 = vunpack.c.l.b16 %v1182
  %v1283 = vunpack.c.h.b16 %v1182
  %v1284 = vunpack.c.l.b16 %v1183
  %v1285 = vunpack.c.h.b16 %v1183
  %v1286 = vunpack.c.l.b16 %v1184
  %v1287 = vunpack.c.h.b16 %v1184
  %v1288 = vunpack.c.l.b16 %v1185
  %v1289 = vunpack.c.h.b16 %v1185
  %v1290 = vunpack.c.l.b16 %v1186
  %v1291 = vunpack.c.h.b16 %v1186
  %v1292 = vunpack.c.l.b16 %v1187
  %v1293 = vunpack.c.h.b16 %v1187
  %v1294 = vunpack.c.l.b16 %v1188
  %v1295 = vunpack.c.h.b16 %v1188
  %v1296 = vunpack.c.l.b16 %v1189
  %v1297 = vunpack.c.h.b16 %v1189
  %v1298 = vunpack.c.l.b16 %v1190
  %v1299 = vunpack.c.h.b16 %v1190
  %v1300 = vunpack.c.l.b16 %v1191
  %v1301 = vunpack.c.h.b16 %v1191
  %v1302 = vunpack.c.l.b16 %v1192
  %v1303 = vunpack.c.h.b16 %v1192
  %v1304 = vpack.c.b16 %v1242, %v1240
  %v1305 = vpack.c.b16 %v1243, %v1241
  %v1306 = vpack.c.b16 %v1246, %v1244
  %v1307 = vpack.c.b16 %v1247, %v1245
  %v1308 = vpack.c.b16 %v1250, %v1248
  %v1309 = vpack.c.b16 %v1251, %v1249
  %v1310 = vpack.c.b16 %v1254, %v1252
  %v1311 = vpack.c.b16 %v1255, %v1253
  %v1312 = vpack.c.b16 %v1258, %v1256
  %v1313 = vpack.c.b16 %v1259, %v1257
  %v1314 = vpack.c.b16 %v1262, %v1260
  %v1315 = vpack.c.b16 %v1263, %v1261
  %v1316 = vpack.c.b16 %v1266, %v1264
  %v1317 = vpack.c.b16 %v1267, %v1265
  %v1318 = vpack.c.b16 %v1270, %v1268
  %v1319 = vpack.c.b16 %v1271, %v1269
  %v1320 = vpack.c.b16 %v1274, %v1272
  %v1321 = vpack.c.b16 %v1275, %v1273
  %v1322 = vpack.c.b16 %v1278, %v1276
  %v1323 = vpack.c.b16 %v1279, %v1277
  %v1324 = vpack.c.b16 %v1282, %v1280
  %v1325 = vpack.c.b16 %v1283, %v1281
  %v1326 = vpack.c.b16 %v1286, %v1284
  %v1327 = vpack.c.b16 %v1287, %v1285
  %v1328 = vpack.c.b16 %v1290, %v1288
  %v1329 = vpack.c.b16 %v1291, %v1289
  %v1330 = vpack.c.b16 %v1294, %v1292
  %v1331 = vpack.c.b16 %v1295, %v1293
  %v1332 = vpack.c.b16 %v1298, %v1296
  %v1333 = vpack.c.b16 %v1299, %v1297
  %v1334 = vpack.c.b16 %v1302, %v1300
  %v1335 = vpack.c.b16 %v1303, %v1301
  %1368 = vmatprep.subr.bf16.mxu0 %v1319
  %1369 = vmatpush1.bf16.msra.mxu0 %v1318
  %1370 = vmatprep.subr.bf16.mxu0 %v1317
  %1371 = vmatpush1.bf16.msra.mxu0 %v1316
  %1372 = vmatprep.subr.bf16.mxu0 %v1315
  %1373 = vmatpush1.bf16.msra.mxu0 %v1314
  %1374 = vmatprep.subr.bf16.mxu0 %v1313
  %1375 = vmatpush1.bf16.msra.mxu0 %v1312
  %1376 = vmatprep.subr.bf16.mxu0 %v1311
  %1377 = vmatpush1.bf16.msra.mxu0 %v1310
  %1378 = vmatprep.subr.bf16.mxu0 %v1309
  %1379 = vmatpush1.bf16.msra.mxu0 %v1308
  %1380 = vmatprep.subr.bf16.mxu0 %v1307
  %1381 = vmatpush1.bf16.msra.mxu0 %v1306
  %1382 = vmatprep.subr.bf16.mxu0 %v1305
  %1383 = vmatpush1.bf16.msra.mxu0 %v1304
  %1384 = vmatprep.subr.bf16.mxu0 %v1335
  %1385 = vmatpush2.bf16.msra.mxu0 %v1334
  %1386 = vmatprep.subr.bf16.mxu0 %v1333
  %1387 = vmatpush2.bf16.msra.mxu0 %v1332
  %1388 = vmatprep.subr.bf16.mxu0 %v1331
  %1389 = vmatpush2.bf16.msra.mxu0 %v1330
  %1390 = vmatprep.subr.bf16.mxu0 %v1329
  %1391 = vmatpush2.bf16.msra.mxu0 %v1328
  %1392 = vmatprep.subr.bf16.mxu0 %v1327
  %1393 = vmatpush2.bf16.msra.mxu0 %v1326
  %1394 = vmatprep.subr.bf16.mxu0 %v1325
  %1395 = vmatpush2.bf16.msra.mxu0 %v1324
  %1396 = vmatprep.subr.bf16.mxu0 %v1323
  %1397 = vmatpush2.bf16.msra.mxu0 %v1322
  %1398 = vmatprep.subr.bf16.mxu0 %v1321
  %1399 = vmatpush2.bf16.msra.mxu0 %v1320
  %1400 = vmatprep.mubr.bf16.mxu0 %v1194
  %1401 = vmatmul.mubr.bf16.gmra.mxu0 %v1193
  %v1402 = vpop.f32.mrf.mxu0
  %v1403 = vadd.f32 %v1201, %v1402
  %v1404 = vpop.f32.mrf.mxu0
  %v1405 = vadd.f32 %v1205, %v1404
  %v1406 = vpop.f32.mrf.mxu0
  %v1407 = vpop.f32.mrf.mxu0
  %1408 = vdwg.mxu0
  %v1409 = vld [vmem:[%s1] sm:$0xff]
  %v1410 = vmul.f32 %v1405, 0.5
  %v1411 = vmul.f32 %v1410, 1.442695
  %v1412 = vpow.pop %v1411
  %v1413 = vmul.f32 %v1409, %v1412
  %v1414 = vadd.f32 %v1413, %v1403
  %v1415 = vld [vmem:[%s7] sm:$0xf]
  %v1416 = vld [vmem:[%s7 + $0x8] sm:$0xf]
  %v1417 = vld [vmem:[%s7 + $0x10] sm:$0xf]
  %v1418 = vld [vmem:[%s7 + $0x18] sm:$0xf]
  %v1419 = vld [vmem:[%s7 + $0x20] sm:$0xf]
  %v1420 = vld [vmem:[%s7 + $0x28] sm:$0xf]
  %v1421 = vld [vmem:[%s7 + $0x30] sm:$0xf]
  %v1422 = vld [vmem:[%s7 + $0x38] sm:$0xf]
  %v1423 = vld [vmem:[%s7 + $0x40] sm:$0xf]
  %v1424 = vld [vmem:[%s7 + $0x48] sm:$0xf]
  %v1425 = vld [vmem:[%s7 + $0x50] sm:$0xf]
  %v1426 = vld [vmem:[%s7 + $0x58] sm:$0xf]
  %v1427 = vld [vmem:[%s7 + $0x60] sm:$0xf]
  %v1428 = vld [vmem:[%s7 + $0x68] sm:$0xf]
  %v1429 = vld [vmem:[%s7 + $0x70] sm:$0xf]
  %v1430 = vld [vmem:[%s7 + $0x78] sm:$0xf]
  %v1431 = vpack.c.bf16 %v1414, %v1414
  %v1432 = vld [vmem:[%s2 + $0x4] ss:$0 sm:$0xff]
  %v1449 = vunpack.c.l.b16 %v1415
  %v1450 = vunpack.c.l.b16 %v1416
  %v1451 = vunpack.c.l.b16 %v1417
  %v1452 = vunpack.c.l.b16 %v1418
  %v1453 = vunpack.c.l.b16 %v1419
  %v1454 = vunpack.c.l.b16 %v1420
  %v1455 = vunpack.c.l.b16 %v1421
  %v1456 = vunpack.c.l.b16 %v1422
  %v1457 = vunpack.c.l.b16 %v1423
  %v1458 = vunpack.c.l.b16 %v1424
  %v1459 = vunpack.c.l.b16 %v1425
  %v1460 = vunpack.c.l.b16 %v1426
  %v1461 = vunpack.c.l.b16 %v1427
  %v1462 = vunpack.c.l.b16 %v1428
  %v1463 = vunpack.c.l.b16 %v1429
  %v1464 = vunpack.c.l.b16 %v1430
  %v1465 = vpack.c.b16 %v1450, %v1449
  %v1466 = vpack.c.b16 %v1452, %v1451
  %v1467 = vpack.c.b16 %v1454, %v1453
  %v1468 = vpack.c.b16 %v1456, %v1455
  %v1469 = vpack.c.b16 %v1458, %v1457
  %v1470 = vpack.c.b16 %v1460, %v1459
  %v1471 = vpack.c.b16 %v1462, %v1461
  %v1472 = vpack.c.b16 %v1464, %v1463
  %1481 = vmatprep.subr.bf16.mxu0 0
  %1482 = vmatpush1.bf16.msra.mxu0 %v1472
  %1483 = vmatprep.subr.bf16.mxu0 0
  %1484 = vmatpush1.bf16.msra.mxu0 %v1471
  %1485 = vmatprep.subr.bf16.mxu0 0
  %1486 = vmatpush1.bf16.msra.mxu0 %v1470
  %1487 = vmatprep.subr.bf16.mxu0 0
  %1488 = vmatpush1.bf16.msra.mxu0 %v1469
  %1489 = vmatprep.subr.bf16.mxu0 0
  %1490 = vmatpush1.bf16.msra.mxu0 %v1468
  %1491 = vmatprep.subr.bf16.mxu0 0
  %1492 = vmatpush1.bf16.msra.mxu0 %v1467
  %1493 = vmatprep.subr.bf16.mxu0 0
  %1494 = vmatpush1.bf16.msra.mxu0 %v1466
  %1495 = vmatprep.subr.bf16.mxu0 0
  %1496 = vmatpush1.bf16.msra.mxu0 %v1465
  %1497 = vmatprep.subr.bf16.mxu0 0
  %1498 = vmatpush2.bf16.msra.mxu0 0
  %1499 = vmatprep.subr.bf16.mxu0 0
  %1500 = vmatpush2.bf16.msra.mxu0 0
  %1501 = vmatprep.subr.bf16.mxu0 0
  %1502 = vmatpush2.bf16.msra.mxu0 0
  %1503 = vmatprep.subr.bf16.mxu0 0
  %1504 = vmatpush2.bf16.msra.mxu0 0
  %1505 = vmatprep.subr.bf16.mxu0 0
  %1506 = vmatpush2.bf16.msra.mxu0 0
  %1507 = vmatprep.subr.bf16.mxu0 0
  %1508 = vmatpush2.bf16.msra.mxu0 0
  %1509 = vmatprep.subr.bf16.mxu0 0
  %1510 = vmatpush2.bf16.msra.mxu0 0
  %1511 = vmatprep.subr.bf16.mxu0 0
  %1512 = vmatpush2.bf16.msra.mxu0 0
  %1513 = vmatprep.mubr.bf16.mxu0 0
  %1514 = vmatmul.mubr.bf16.gmra.mxu0 %v1431
  %v1515 = vpop.f32.mrf.mxu0
  %v1516 = vadd.f32 %v1432, %v1515
  %v1517 = vpop.f32.mrf.mxu0
  %v1518 = vpop.f32.mrf.mxu0
  %v1519 = vpop.f32.mrf.mxu0
  %1520 = vdwg.mxu0
  %v1521 = vtanh.pop %v1516
  %v1522 = vld [vmem:[%s7 + $0x4] sm:$0xf]
  %v1523 = vld [vmem:[%s7 + $0xc] sm:$0xf]
  %v1524 = vld [vmem:[%s7 + $0x14] sm:$0xf]
  %v1525 = vld [vmem:[%s7 + $0x1c] sm:$0xf]
  %v1526 = vld [vmem:[%s7 + $0x24] sm:$0xf]
  %v1527 = vld [vmem:[%s7 + $0x2c] sm:$0xf]
  %v1528 = vld [vmem:[%s7 + $0x34] sm:$0xf]
  %v1529 = vld [vmem:[%s7 + $0x3c] sm:$0xf]
  %v1530 = vld [vmem:[%s7 + $0x44] sm:$0xf]
  %v1531 = vld [vmem:[%s7 + $0x4c] sm:$0xf]
  %v1532 = vld [vmem:[%s7 + $0x54] sm:$0xf]
  %v1533 = vld [vmem:[%s7 + $0x5c] sm:$0xf]
  %v1534 = vld [vmem:[%s7 + $0x64] sm:$0xf]
  %v1535 = vld [vmem:[%s7 + $0x6c] sm:$0xf]
  %v1536 = vld [vmem:[%s7 + $0x74] sm:$0xf]
  %v1537 = vld [vmem:[%s7 + $0x7c] sm:$0xf]
  %v1538 = vpack.c.bf16 %v1521, %v1521
  %v1539 = vld [vmem:[%s2 + $0x5] ss:$0 sm:$0xff]
  %v1556 = vunpack.c.l.b16 %v1522
  %v1557 = vunpack.c.l.b16 %v1523
  %v1558 = vunpack.c.l.b16 %v1524
  %v1559 = vunpack.c.l.b16 %v1525
  %v1560 = vunpack.c.l.b16 %v1526
  %v1561 = vunpack.c.l.b16 %v1527
  %v1562 = vunpack.c.l.b16 %v1528
  %v1563 = vunpack.c.l.b16 %v1529
  %v1564 = vunpack.c.l.b16 %v1530
  %v1565 = vunpack.c.l.b16 %v1531
  %v1566 = vunpack.c.l.b16 %v1532
  %v1567 = vunpack.c.l.b16 %v1533
  %v1568 = vunpack.c.l.b16 %v1534
  %v1569 = vunpack.c.l.b16 %v1535
  %v1570 = vunpack.c.l.b16 %v1536
  %v1571 = vunpack.c.l.b16 %v1537
  %v1572 = vpack.c.b16 %v1557, %v1556
  %v1573 = vpack.c.b16 %v1559, %v1558
  %v1574 = vpack.c.b16 %v1561, %v1560
  %v1575 = vpack.c.b16 %v1563, %v1562
  %v1576 = vpack.c.b16 %v1565, %v1564
  %v1577 = vpack.c.b16 %v1567, %v1566
  %v1578 = vpack.c.b16 %v1569, %v1568
  %v1579 = vpack.c.b16 %v1571, %v1570
  %1588 = vmatprep.subr.bf16.mxu0 0
  %1589 = vmatpush1.bf16.msra.mxu0 %v1579
  %1590 = vmatprep.subr.bf16.mxu0 0
  %1591 = vmatpush1.bf16.msra.mxu0 %v1578
  %1592 = vmatprep.subr.bf16.mxu0 0
  %1593 = vmatpush1.bf16.msra.mxu0 %v1577
  %1594 = vmatprep.subr.bf16.mxu0 0
  %1595 = vmatpush1.bf16.msra.mxu0 %v1576
  %1596 = vmatprep.subr.bf16.mxu0 0
  %1597 = vmatpush1.bf16.msra.mxu0 %v1575
  %1598 = vmatprep.subr.bf16.mxu0 0
  %1599 = vmatpush1.bf16.msra.mxu0 %v1574
  %1600 = vmatprep.subr.bf16.mxu0 0
  %1601 = vmatpush1.bf16.msra.mxu0 %v1573
  %1602 = vmatprep.subr.bf16.mxu0 0
  %1603 = vmatpush1.bf16.msra.mxu0 %v1572
  %1604 = vmatprep.subr.bf16.mxu0 0
  %1605 = vmatpush2.bf16.msra.mxu0 0
  %1606 = vmatprep.subr.bf16.mxu0 0
  %1607 = vmatpush2.bf16.msra.mxu0 0
  %1608 = vmatprep.subr.bf16.mxu0 0
  %1609 = vmatpush2.bf16.msra.mxu0 0
  %1610 = vmatprep.subr.bf16.mxu0 0
  %1611 = vmatpush2.bf16.msra.mxu0 0
  %1612 = vmatprep.subr.bf16.mxu0 0
  %1613 = vmatpush2.bf16.msra.mxu0 0
  %1614 = vmatprep.subr.bf16.mxu0 0
  %1615 = vmatpush2.bf16.msra.mxu0 0
  %1616 = vmatprep.subr.bf16.mxu0 0
  %1617 = vmatpush2.bf16.msra.mxu0 0
  %1618 = vmatprep.subr.bf16.mxu0 0
  %1619 = vmatpush2.bf16.msra.mxu0 0
  %1620 = vmatprep.mubr.bf16.mxu0 0
  %1621 = vmatmul.mubr.bf16.gmra.mxu0 %v1538
  %v1622 = vpop.f32.mrf.mxu0
  %v1623 = vadd.f32 %v1539, %v1622
  %v1624 = vpop.f32.mrf.mxu0
  %v1625 = vpop.f32.mrf.mxu0
  %v1626 = vpop.f32.mrf.mxu0
  %1627 = vdwg.mxu0
  %v1628 = vtanh.pop %v1623
  %v1629 = vld [vmem:[%s8] sm:$0xff]
  %v1630 = vld [vmem:[%s8 + $0x8] sm:$0xff]
  %v1631 = vld [vmem:[%s8 + $0x10] sm:$0xff]
  %v1632 = vld [vmem:[%s8 + $0x18] sm:$0xff]
  %v1633 = vld [vmem:[%s8 + $0x20] sm:$0xff]
  %v1634 = vld [vmem:[%s8 + $0x28] sm:$0xff]
  %v1635 = vld [vmem:[%s8 + $0x30] sm:$0xff]
  %v1636 = vld [vmem:[%s8 + $0x38] sm:$0xff]
  %v1637 = vld [vmem:[%s8 + $0x40] sm:$0xff]
  %v1638 = vld [vmem:[%s8 + $0x48] sm:$0xff]
  %v1639 = vld [vmem:[%s8 + $0x50] sm:$0xff]
  %v1640 = vld [vmem:[%s8 + $0x58] sm:$0xff]
  %v1641 = vld [vmem:[%s8 + $0x60] sm:$0xff]
  %v1642 = vld [vmem:[%s8 + $0x68] sm:$0xff]
  %v1643 = vld [vmem:[%s8 + $0x70] sm:$0xff]
  %v1644 = vld [vmem:[%s8 + $0x78] sm:$0xff]
  %v1645 = vpack.c.bf16 %v1628, %v1628
  %s1646 = scalar_lea.vmem %s2, 6
  %v1647 = vld [vmem:[%s1646] ss:$8 sm:$0x3]
  %v1649 = vlaneseq
  %v1650 = vshrl.u32 %v1649, 7
  %v1651 = vsub.s32 0, %v1650
  %v1652 = vrot.slane %v1647, %v1651
  %v1653 = vlaneseq
  %v1654 = vshrl.u32 %v1653, 7
  %v1655 = vsub.s32 1, %v1654
  %v1656 = vrot.slane %v1647, %v1655
  %v1675 = vunpack.c.l.b16 %v1629
  %v1676 = vunpack.c.h.b16 %v1629
  %v1677 = vunpack.c.l.b16 %v1630
  %v1678 = vunpack.c.h.b16 %v1630
  %v1679 = vunpack.c.l.b16 %v1631
  %v1680 = vunpack.c.h.b16 %v1631
  %v1681 = vunpack.c.l.b16 %v1632
  %v1682 = vunpack.c.h.b16 %v1632
  %v1683 = vunpack.c.l.b16 %v1633
  %v1684 = vunpack.c.h.b16 %v1633
  %v1685 = vunpack.c.l.b16 %v1634
  %v1686 = vunpack.c.h.b16 %v1634
  %v1687 = vunpack.c.l.b16 %v1635
  %v1688 = vunpack.c.h.b16 %v1635
  %v1689 = vunpack.c.l.b16 %v1636
  %v1690 = vunpack.c.h.b16 %v1636
  %v1691 = vunpack.c.l.b16 %v1637
  %v1692 = vunpack.c.h.b16 %v1637
  %v1693 = vunpack.c.l.b16 %v1638
  %v1694 = vunpack.c.h.b16 %v1638
  %v1695 = vunpack.c.l.b16 %v1639
  %v1696 = vunpack.c.h.b16 %v1639
  %v1697 = vunpack.c.l.b16 %v1640
  %v1698 = vunpack.c.h.b16 %v1640
  %v1699 = vunpack.c.l.b16 %v1641
  %v1700 = vunpack.c.h.b16 %v1641
  %v1701 = vunpack.c.l.b16 %v1642
  %v1702 = vunpack.c.h.b16 %v1642
  %v1703 = vunpack.c.l.b16 %v1643
  %v1704 = vunpack.c.h.b16 %v1643
  %v1705 = vunpack.c.l.b16 %v1644
  %v1706 = vunpack.c.h.b16 %v1644
  %v1707 = vpack.c.b16 %v1677, %v1675
  %v1708 = vpack.c.b16 %v1678, %v1676
  %v1709 = vpack.c.b16 %v1681, %v1679
  %v1710 = vpack.c.b16 %v1682, %v1680
  %v1711 = vpack.c.b16 %v1685, %v1683
  %v1712 = vpack.c.b16 %v1686, %v1684
  %v1713 = vpack.c.b16 %v1689, %v1687
  %v1714 = vpack.c.b16 %v1690, %v1688
  %v1715 = vpack.c.b16 %v1693, %v1691
  %v1716 = vpack.c.b16 %v1694, %v1692
  %v1717 = vpack.c.b16 %v1697, %v1695
  %v1718 = vpack.c.b16 %v1698, %v1696
  %v1719 = vpack.c.b16 %v1701, %v1699
  %v1720 = vpack.c.b16 %v1702, %v1700
  %v1721 = vpack.c.b16 %v1705, %v1703
  %v1722 = vpack.c.b16 %v1706, %v1704
  %1739 = vmatprep.subr.bf16.mxu0 %v1722
  %1740 = vmatpush1.bf16.msra.mxu0 %v1721
  %1741 = vmatprep.subr.bf16.mxu0 %v1720
  %1742 = vmatpush1.bf16.msra.mxu0 %v1719
  %1743 = vmatprep.subr.bf16.mxu0 %v1718
  %1744 = vmatpush1.bf16.msra.mxu0 %v1717
  %1745 = vmatprep.subr.bf16.mxu0 %v1716
  %1746 = vmatpush1.bf16.msra.mxu0 %v1715
  %1747 = vmatprep.subr.bf16.mxu0 %v1714
  %1748 = vmatpush1.bf16.msra.mxu0 %v1713
  %1749 = vmatprep.subr.bf16.mxu0 %v1712
  %1750 = vmatpush1.bf16.msra.mxu0 %v1711
  %1751 = vmatprep.subr.bf16.mxu0 %v1710
  %1752 = vmatpush1.bf16.msra.mxu0 %v1709
  %1753 = vmatprep.subr.bf16.mxu0 %v1708
  %1754 = vmatpush1.bf16.msra.mxu0 %v1707
  %1755 = vmatprep.subr.bf16.mxu0 0
  %1756 = vmatpush2.bf16.msra.mxu0 0
  %1757 = vmatprep.subr.bf16.mxu0 0
  %1758 = vmatpush2.bf16.msra.mxu0 0
  %1759 = vmatprep.subr.bf16.mxu0 0
  %1760 = vmatpush2.bf16.msra.mxu0 0
  %1761 = vmatprep.subr.bf16.mxu0 0
  %1762 = vmatpush2.bf16.msra.mxu0 0
  %1763 = vmatprep.subr.bf16.mxu0 0
  %1764 = vmatpush2.bf16.msra.mxu0 0
  %1765 = vmatprep.subr.bf16.mxu0 0
  %1766 = vmatpush2.bf16.msra.mxu0 0
  %1767 = vmatprep.subr.bf16.mxu0 0
  %1768 = vmatpush2.bf16.msra.mxu0 0
  %1769 = vmatprep.subr.bf16.mxu0 0
  %1770 = vmatpush2.bf16.msra.mxu0 0
  %1771 = vmatprep.mubr.bf16.mxu0 0
  %1772 = vmatmul.mubr.bf16.gmra.mxu0 %v1645
  %v1773 = vpop.f32.mrf.mxu0
  %v1774 = vadd.f32 %v1652, %v1773
  %v1775 = vpop.f32.mrf.mxu0
  %v1776 = vadd.f32 %v1656, %v1775
  %v1777 = vpop.f32.mrf.mxu0
  %v1778 = vpop.f32.mrf.mxu0
  %1779 = vdwg.mxu0
  %v1780 = vtanh.pop %v1774
  %v1781 = vtanh.pop %v1776
  %v1782 = vld [vmem:[%s9] sm:$0xff]
  %v1783 = vld [vmem:[%s9 + $0x8] sm:$0xff]
  %v1784 = vld [vmem:[%s9 + $0x10] sm:$0xff]
  %v1785 = vld [vmem:[%s9 + $0x18] sm:$0xf]
  %v1786 = vld [vmem:[%s9 + $0x1c] sm:$0xff]
  %v1787 = vld [vmem:[%s9 + $0x24] sm:$0xff]
  %v1788 = vld [vmem:[%s9 + $0x2c] sm:$0xff]
  %v1789 = vld [vmem:[%s9 + $0x34] sm:$0xf]
  %v1790 = vld [vmem:[%s9 + $0x38] sm:$0xff]
  %v1791 = vld [vmem:[%s9 + $0x40] sm:$0xff]
  %v1792 = vld [vmem:[%s9 + $0x48] sm:$0xff]
  %v1793 = vld [vmem:[%s9 + $0x50] sm:$0xf]
  %v1794 = vld [vmem:[%s9 + $0x54] sm:$0xff]
  %v1795 = vld [vmem:[%s9 + $0x5c] sm:$0xff]
  %v1796 = vld [vmem:[%s9 + $0x64] sm:$0xff]
  %v1797 = vld [vmem:[%s9 + $0x6c] sm:$0xf]
  %v1798 = vld [vmem:[%s9 + $0x70] sm:$0xff]
  %v1799 = vld [vmem:[%s9 + $0x78] sm:$0xff]
  %v1800 = vld [vmem:[%s9 + $0x80] sm:$0xff]
  %v1801 = vld [vmem:[%s9 + $0x88] sm:$0xf]
  %v1802 = vld [vmem:[%s9 + $0x8c] sm:$0xff]
  %v1803 = vld [vmem:[%s9 + $0x94] sm:$0xff]
  %v1804 = vld [vmem:[%s9 + $0x9c] sm:$0xff]
  %v1805 = vld [vmem:[%s9 + $0xa4] sm:$0xf]
  %v1806 = vld [vmem:[%s9 + $0xa8] sm:$0xff]
  %v1807 = vld [vmem:[%s9 + $0xb0] sm:$0xff]
  %v1808 = vld [vmem:[%s9 + $0xb8] sm:$0xff]
  %v1809 = vld [vmem:[%s9 + $0xc0] sm:$0xf]
  %v1810 = vld [vmem:[%s9 + $0xc4] sm:$0xff]
  %v1811 = vld [vmem:[%s9 + $0xcc] sm:$0xff]
  %v1812 = vld [vmem:[%s9 + $0xd4] sm:$0xff]
  %v1813 = vld [vmem:[%s9 + $0xdc] sm:$0xf]
  %v1814 = vld [vmem:[%s9 + $0xe0] sm:$0xff]
  %v1815 = vld [vmem:[%s9 + $0xe8] sm:$0xff]
  %v1816 = vld [vmem:[%s9 + $0xf0] sm:$0xff]
  %v1817 = vld [vmem:[%s9 + $0xf8] sm:$0xf]
  %v1818 = vld [vmem:[%s9 + $0xfc] sm:$0xff]
  %v1819 = vld [vmem:[%s9 + $0x104] sm:$0xff]
  %v1820 = vld [vmem:[%s9 + $0x10c] sm:$0xff]
  %v1821 = vld [vmem:[%s9 + $0x114] sm:$0xf]
  %v1822 = vld [vmem:[%s9 + $0x118] sm:$0xff]
  %v1823 = vld [vmem:[%s9 + $0x120] sm:$0xff]
  %v1824 = vld [vmem:[%s9 + $0x128] sm:$0xff]
  %v1825 = vld [vmem:[%s9 + $0x130] sm:$0xf]
  %v1826 = vld [vmem:[%s9 + $0x134] sm:$0xff]
  %v1827 = vld [vmem:[%s9 + $0x13c] sm:$0xff]
  %v1828 = vld [vmem:[%s9 + $0x144] sm:$0xff]
  %v1829 = vld [vmem:[%s9 + $0x14c] sm:$0xf]
  %v1830 = vld [vmem:[%s9 + $0x150] sm:$0xff]
  %v1831 = vld [vmem:[%s9 + $0x158] sm:$0xff]
  %v1832 = vld [vmem:[%s9 + $0x160] sm:$0xff]
  %v1833 = vld [vmem:[%s9 + $0x168] sm:$0xf]
  %v1834 = vld [vmem:[%s9 + $0x16c] sm:$0xff]
  %v1835 = vld [vmem:[%s9 + $0x174] sm:$0xff]
  %v1836 = vld [vmem:[%s9 + $0x17c] sm:$0xff]
  %v1837 = vld [vmem:[%s9 + $0x184] sm:$0xf]
  %v1838 = vld [vmem:[%s9 + $0x188] sm:$0xff]
  %v1839 = vld [vmem:[%s9 + $0x190] sm:$0xff]
  %v1840 = vld [vmem:[%s9 + $0x198] sm:$0xff]
  %v1841 = vld [vmem:[%s9 + $0x1a0] sm:$0xf]
  %v1842 = vld [vmem:[%s9 + $0x1a4] sm:$0xff]
  %v1843 = vld [vmem:[%s9 + $0x1ac] sm:$0xff]
  %v1844 = vld [vmem:[%s9 + $0x1b4] sm:$0xff]
  %v1845 = vld [vmem:[%s9 + $0x1bc] sm:$0xf]
  %v1846 = vld [vmem:[%s9 + $0x1c0] sm:$0xff]
  %v1847 = vld [vmem:[%s9 + $0x1c8] sm:$0xff]
  %v1848 = vld [vmem:[%s9 + $0x1d0] sm:$0xff]
  %v1849 = vld [vmem:[%s9 + $0x1d8] sm:$0xf]
  %v1850 = vld [vmem:[%s9 + $0x1dc] sm:$0xff]
  %v1851 = vld [vmem:[%s9 + $0x1e4] sm:$0xff]
  %v1852 = vld [vmem:[%s9 + $0x1ec] sm:$0xff]
  %v1853 = vld [vmem:[%s9 + $0x1f4] sm:$0xf]
  %v1854 = vld [vmem:[%s9 + $0x1f8] sm:$0xff]
  %v1855 = vld [vmem:[%s9 + $0x200] sm:$0xff]
  %v1856 = vld [vmem:[%s9 + $0x208] sm:$0xff]
  %v1857 = vld [vmem:[%s9 + $0x210] sm:$0xf]
  %v1858 = vld [vmem:[%s9 + $0x214] sm:$0xff]
  %v1859 = vld [vmem:[%s9 + $0x21c] sm:$0xff]
  %v1860 = vld [vmem:[%s9 + $0x224] sm:$0xff]
  %v1861 = vld [vmem:[%s9 + $0x22c] sm:$0xf]
  %v1862 = vld [vmem:[%s9 + $0x230] sm:$0xff]
  %v1863 = vld [vmem:[%s9 + $0x238] sm:$0xff]
  %v1864 = vld [vmem:[%s9 + $0x240] sm:$0xff]
  %v1865 = vld [vmem:[%s9 + $0x248] sm:$0xf]
  %v1866 = vld [vmem:[%s9 + $0x24c] sm:$0xff]
  %v1867 = vld [vmem:[%s9 + $0x254] sm:$0xff]
  %v1868 = vld [vmem:[%s9 + $0x25c] sm:$0xff]
  %v1869 = vld [vmem:[%s9 + $0x264] sm:$0xf]
  %v1870 = vld [vmem:[%s9 + $0x268] sm:$0xff]
  %v1871 = vld [vmem:[%s9 + $0x270] sm:$0xff]
  %v1872 = vld [vmem:[%s9 + $0x278] sm:$0xff]
  %v1873 = vld [vmem:[%s9 + $0x280] sm:$0xf]
  %v1874 = vld [vmem:[%s9 + $0x284] sm:$0xff]
  %v1875 = vld [vmem:[%s9 + $0x28c] sm:$0xff]
  %v1876 = vld [vmem:[%s9 + $0x294] sm:$0xff]
  %v1877 = vld [vmem:[%s9 + $0x29c] sm:$0xf]
  %v1878 = vld [vmem:[%s9 + $0x2a0] sm:$0xff]
  %v1879 = vld [vmem:[%s9 + $0x2a8] sm:$0xff]
  %v1880 = vld [vmem:[%s9 + $0x2b0] sm:$0xff]
  %v1881 = vld [vmem:[%s9 + $0x2b8] sm:$0xf]
  %v1882 = vld [vmem:[%s9 + $0x2bc] sm:$0xff]
  %v1883 = vld [vmem:[%s9 + $0x2c4] sm:$0xff]
  %v1884 = vld [vmem:[%s9 + $0x2cc] sm:$0xff]
  %v1885 = vld [vmem:[%s9 + $0x2d4] sm:$0xf]
  %v1886 = vld [vmem:[%s9 + $0x2d8] sm:$0xff]
  %v1887 = vld [vmem:[%s9 + $0x2e0] sm:$0xff]
  %v1888 = vld [vmem:[%s9 + $0x2e8] sm:$0xff]
  %v1889 = vld [vmem:[%s9 + $0x2f0] sm:$0xf]
  %v1890 = vld [vmem:[%s9 + $0x2f4] sm:$0xff]
  %v1891 = vld [vmem:[%s9 + $0x2fc] sm:$0xff]
  %v1892 = vld [vmem:[%s9 + $0x304] sm:$0xff]
  %v1893 = vld [vmem:[%s9 + $0x30c] sm:$0xf]
  %v1894 = vld [vmem:[%s9 + $0x310] sm:$0xff]
  %v1895 = vld [vmem:[%s9 + $0x318] sm:$0xff]
  %v1896 = vld [vmem:[%s9 + $0x320] sm:$0xff]
  %v1897 = vld [vmem:[%s9 + $0x328] sm:$0xf]
  %v1898 = vld [vmem:[%s9 + $0x32c] sm:$0xff]
  %v1899 = vld [vmem:[%s9 + $0x334] sm:$0xff]
  %v1900 = vld [vmem:[%s9 + $0x33c] sm:$0xff]
  %v1901 = vld [vmem:[%s9 + $0x344] sm:$0xf]
  %v1902 = vld [vmem:[%s9 + $0x348] sm:$0xff]
  %v1903 = vld [vmem:[%s9 + $0x350] sm:$0xff]
  %v1904 = vld [vmem:[%s9 + $0x358] sm:$0xff]
  %v1905 = vld [vmem:[%s9 + $0x360] sm:$0xf]
  %v1906 = vld [vmem:[%s9 + $0x364] sm:$0xff]
  %v1907 = vld [vmem:[%s9 + $0x36c] sm:$0xff]
  %v1908 = vld [vmem:[%s9 + $0x374] sm:$0xff]
  %v1909 = vld [vmem:[%s9 + $0x37c] sm:$0xf]
  %v1910 = vpack.c.bf16 %v1780, %v1780
  %v1911 = vpack.c.bf16 %v1781, %v1781
  %s1912 = scalar_lea.vmem %s2, 7
  %v1913 = vld [vmem:[%s1912] ss:$8 sm:$0xf]
  %v1914 = vld [vmem:[%s1912] ss:$8 sm:$0x70]
  %v1915 = vor.u32 %v1913, %v1914
  %v1917 = vlaneseq
  %v1918 = vshrl.u32 %v1917, 7
  %v1919 = vsub.s32 0, %v1918
  %v1920 = vrot.slane %v1915, %v1919
  %v1921 = vlaneseq
  %v1922 = vshrl.u32 %v1921, 7
  %v1923 = vsub.s32 1, %v1922
  %v1924 = vrot.slane %v1915, %v1923
  %v1925 = vlaneseq
  %v1926 = vshrl.u32 %v1925, 7
  %v1927 = vsub.s32 2, %v1926
  %v1928 = vrot.slane %v1915, %v1927
  %v1929 = vlaneseq
  %v1930 = vshrl.u32 %v1929, 7
  %v1931 = vsub.s32 3, %v1930
  %v1932 = vrot.slane %v1915, %v1931
  %v1933 = vlaneseq
  %v1934 = vshrl.u32 %v1933, 7
  %v1935 = vsub.s32 4, %v1934
  %v1936 = vrot.slane %v1915, %v1935
  %v1937 = vlaneseq
  %v1938 = vshrl.u32 %v1937, 7
  %v1939 = vsub.s32 5, %v1938
  %v1940 = vrot.slane %v1915, %v1939
  %v1941 = vlaneseq
  %v1942 = vshrl.u32 %v1941, 7
  %v1943 = vsub.s32 6, %v1942
  %v1944 = vrot.slane %v1915, %v1943
  %v2080 = vunpack.c.l.b16 %v1782
  %v2081 = vunpack.c.h.b16 %v1782
  %v2082 = vunpack.c.l.b16 %v1783
  %v2083 = vunpack.c.h.b16 %v1783
  %v2084 = vunpack.c.l.b16 %v1784
  %v2085 = vunpack.c.h.b16 %v1784
  %v2086 = vunpack.c.l.b16 %v1785
  %v2087 = vunpack.c.l.b16 %v1786
  %v2088 = vunpack.c.h.b16 %v1786
  %v2089 = vunpack.c.l.b16 %v1787
  %v2090 = vunpack.c.h.b16 %v1787
  %v2091 = vunpack.c.l.b16 %v1788
  %v2092 = vunpack.c.h.b16 %v1788
  %v2093 = vunpack.c.l.b16 %v1789
  %v2094 = vunpack.c.l.b16 %v1790
  %v2095 = vunpack.c.h.b16 %v1790
  %v2096 = vunpack.c.l.b16 %v1791
  %v2097 = vunpack.c.h.b16 %v1791
  %v2098 = vunpack.c.l.b16 %v1792
  %v2099 = vunpack.c.h.b16 %v1792
  %v2100 = vunpack.c.l.b16 %v1793
  %v2101 = vunpack.c.l.b16 %v1794
  %v2102 = vunpack.c.h.b16 %v1794
  %v2103 = vunpack.c.l.b16 %v1795
  %v2104 = vunpack.c.h.b16 %v1795
  %v2105 = vunpack.c.l.b16 %v1796
  %v2106 = vunpack.c.h.b16 %v1796
  %v2107 = vunpack.c.l.b16 %v1797
  %v2108 = vunpack.c.l.b16 %v1798
  %v2109 = vunpack.c.h.b16 %v1798
  %v2110 = vunpack.c.l.b16 %v1799
  %v2111 = vunpack.c.h.b16 %v1799
  %v2112 = vunpack.c.l.b16 %v1800
  %v2113 = vunpack.c.h.b16 %v1800
  %v2114 = vunpack.c.l.b16 %v1801
  %v2115 = vunpack.c.l.b16 %v1802
  %v2116 = vunpack.c.h.b16 %v1802
  %v2117 = vunpack.c.l.b16 %v1803
  %v2118 = vunpack.c.h.b16 %v1803
  %v2119 = vunpack.c.l.b16 %v1804
  %v2120 = vunpack.c.h.b16 %v1804
  %v2121 = vunpack.c.l.b16 %v1805
  %v2122 = vunpack.c.l.b16 %v1806
  %v2123 = vunpack.c.h.b16 %v1806
  %v2124 = vunpack.c.l.b16 %v1807
  %v2125 = vunpack.c.h.b16 %v1807
  %v2126 = vunpack.c.l.b16 %v1808
  %v2127 = vunpack.c.h.b16 %v1808
  %v2128 = vunpack.c.l.b16 %v1809
  %v2129 = vunpack.c.l.b16 %v1810
  %v2130 = vunpack.c.h.b16 %v1810
  %v2131 = vunpack.c.l.b16 %v1811
  %v2132 = vunpack.c.h.b16 %v1811
  %v2133 = vunpack.c.l.b16 %v1812
  %v2134 = vunpack.c.h.b16 %v1812
  %v2135 = vunpack.c.l.b16 %v1813
  %v2136 = vunpack.c.l.b16 %v1814
  %v2137 = vunpack.c.h.b16 %v1814
  %v2138 = vunpack.c.l.b16 %v1815
  %v2139 = vunpack.c.h.b16 %v1815
  %v2140 = vunpack.c.l.b16 %v1816
  %v2141 = vunpack.c.h.b16 %v1816
  %v2142 = vunpack.c.l.b16 %v1817
  %v2143 = vunpack.c.l.b16 %v1818
  %v2144 = vunpack.c.h.b16 %v1818
  %v2145 = vunpack.c.l.b16 %v1819
  %v2146 = vunpack.c.h.b16 %v1819
  %v2147 = vunpack.c.l.b16 %v1820
  %v2148 = vunpack.c.h.b16 %v1820
  %v2149 = vunpack.c.l.b16 %v1821
  %v2150 = vunpack.c.l.b16 %v1822
  %v2151 = vunpack.c.h.b16 %v1822
  %v2152 = vunpack.c.l.b16 %v1823
  %v2153 = vunpack.c.h.b16 %v1823
  %v2154 = vunpack.c.l.b16 %v1824
  %v2155 = vunpack.c.h.b16 %v1824
  %v2156 = vunpack.c.l.b16 %v1825
  %v2157 = vunpack.c.l.b16 %v1826
  %v2158 = vunpack.c.h.b16 %v1826
  %v2159 = vunpack.c.l.b16 %v1827
  %v2160 = vunpack.c.h.b16 %v1827
  %v2161 = vunpack.c.l.b16 %v1828
  %v2162 = vunpack.c.h.b16 %v1828
  %v2163 = vunpack.c.l.b16 %v1829
  %v2164 = vunpack.c.l.b16 %v1830
  %v2165 = vunpack.c.h.b16 %v1830
  %v2166 = vunpack.c.l.b16 %v1831
  %v2167 = vunpack.c.h.b16 %v1831
  %v2168 = vunpack.c.l.b16 %v1832
  %v2169 = vunpack.c.h.b16 %v1832
  %v2170 = vunpack.c.l.b16 %v1833
  %v2171 = vunpack.c.l.b16 %v1834
  %v2172 = vunpack.c.h.b16 %v1834
  %v2173 = vunpack.c.l.b16 %v1835
  %v2174 = vunpack.c.h.b16 %v1835
  %v2175 = vunpack.c.l.b16 %v1836
  %v2176 = vunpack.c.h.b16 %v1836
  %v2177 = vunpack.c.l.b16 %v1837
  %v2178 = vunpack.c.l.b16 %v1838
  %v2179 = vunpack.c.h.b16 %v1838
  %v2180 = vunpack.c.l.b16 %v1839
  %v2181 = vunpack.c.h.b16 %v1839
  %v2182 = vunpack.c.l.b16 %v1840
  %v2183 = vunpack.c.h.b16 %v1840
  %v2184 = vunpack.c.l.b16 %v1841
  %v2185 = vunpack.c.l.b16 %v1842
  %v2186 = vunpack.c.h.b16 %v1842
  %v2187 = vunpack.c.l.b16 %v1843
  %v2188 = vunpack.c.h.b16 %v1843
  %v2189 = vunpack.c.l.b16 %v1844
  %v2190 = vunpack.c.h.b16 %v1844
  %v2191 = vunpack.c.l.b16 %v1845
  %v2192 = vunpack.c.l.b16 %v1846
  %v2193 = vunpack.c.h.b16 %v1846
  %v2194 = vunpack.c.l.b16 %v1847
  %v2195 = vunpack.c.h.b16 %v1847
  %v2196 = vunpack.c.l.b16 %v1848
  %v2197 = vunpack.c.h.b16 %v1848
  %v2198 = vunpack.c.l.b16 %v1849
  %v2199 = vunpack.c.l.b16 %v1850
  %v2200 = vunpack.c.h.b16 %v1850
  %v2201 = vunpack.c.l.b16 %v1851
  %v2202 = vunpack.c.h.b16 %v1851
  %v2203 = vunpack.c.l.b16 %v1852
  %v2204 = vunpack.c.h.b16 %v1852
  %v2205 = vunpack.c.l.b16 %v1853
  %v2206 = vunpack.c.l.b16 %v1854
  %v2207 = vunpack.c.h.b16 %v1854
  %v2208 = vunpack.c.l.b16 %v1855
  %v2209 = vunpack.c.h.b16 %v1855
  %v2210 = vunpack.c.l.b16 %v1856
  %v2211 = vunpack.c.h.b16 %v1856
  %v2212 = vunpack.c.l.b16 %v1857
  %v2213 = vunpack.c.l.b16 %v1858
  %v2214 = vunpack.c.h.b16 %v1858
  %v2215 = vunpack.c.l.b16 %v1859
  %v2216 = vunpack.c.h.b16 %v1859
  %v2217 = vunpack.c.l.b16 %v1860
  %v2218 = vunpack.c.h.b16 %v1860
  %v2219 = vunpack.c.l.b16 %v1861
  %v2220 = vunpack.c.l.b16 %v1862
  %v2221 = vunpack.c.h.b16 %v1862
  %v2222 = vunpack.c.l.b16 %v1863
  %v2223 = vunpack.c.h.b16 %v1863
  %v2224 = vunpack.c.l.b16 %v1864
  %v2225 = vunpack.c.h.b16 %v1864
  %v2226 = vunpack.c.l.b16 %v1865
  %v2227 = vunpack.c.l.b16 %v1866
  %v2228 = vunpack.c.h.b16 %v1866
  %v2229 = vunpack.c.l.b16 %v1867
  %v2230 = vunpack.c.h.b16 %v1867
  %v2231 = vunpack.c.l.b16 %v1868
  %v2232 = vunpack.c.h.b16 %v1868
  %v2233 = vunpack.c.l.b16 %v1869
  %v2234 = vunpack.c.l.b16 %v1870
  %v2235 = vunpack.c.h.b16 %v1870
  %v2236 = vunpack.c.l.b16 %v1871
  %v2237 = vunpack.c.h.b16 %v1871
  %v2238 = vunpack.c.l.b16 %v1872
  %v2239 = vunpack.c.h.b16 %v1872
  %v2240 = vunpack.c.l.b16 %v1873
  %v2241 = vunpack.c.l.b16 %v1874
  %v2242 = vunpack.c.h.b16 %v1874
  %v2243 = vunpack.c.l.b16 %v1875
  %v2244 = vunpack.c.h.b16 %v1875
  %v2245 = vunpack.c.l.b16 %v1876
  %v2246 = vunpack.c.h.b16 %v1876
  %v2247 = vunpack.c.l.b16 %v1877
  %v2248 = vunpack.c.l.b16 %v1878
  %v2249 = vunpack.c.h.b16 %v1878
  %v2250 = vunpack.c.l.b16 %v1879
  %v2251 = vunpack.c.h.b16 %v1879
  %v2252 = vunpack.c.l.b16 %v1880
  %v2253 = vunpack.c.h.b16 %v1880
  %v2254 = vunpack.c.l.b16 %v1881
  %v2255 = vunpack.c.l.b16 %v1882
  %v2256 = vunpack.c.h.b16 %v1882
  %v2257 = vunpack.c.l.b16 %v1883
  %v2258 = vunpack.c.h.b16 %v1883
  %v2259 = vunpack.c.l.b16 %v1884
  %v2260 = vunpack.c.h.b16 %v1884
  %v2261 = vunpack.c.l.b16 %v1885
  %v2262 = vunpack.c.l.b16 %v1886
  %v2263 = vunpack.c.h.b16 %v1886
  %v2264 = vunpack.c.l.b16 %v1887
  %v2265 = vunpack.c.h.b16 %v1887
  %v2266 = vunpack.c.l.b16 %v1888
  %v2267 = vunpack.c.h.b16 %v1888
  %v2268 = vunpack.c.l.b16 %v1889
  %v2269 = vunpack.c.l.b16 %v1890
  %v2270 = vunpack.c.h.b16 %v1890
  %v2271 = vunpack.c.l.b16 %v1891
  %v2272 = vunpack.c.h.b16 %v1891
  %v2273 = vunpack.c.l.b16 %v1892
  %v2274 = vunpack.c.h.b16 %v1892
  %v2275 = vunpack.c.l.b16 %v1893
  %v2276 = vunpack.c.l.b16 %v1894
  %v2277 = vunpack.c.h.b16 %v1894
  %v2278 = vunpack.c.l.b16 %v1895
  %v2279 = vunpack.c.h.b16 %v1895
  %v2280 = vunpack.c.l.b16 %v1896
  %v2281 = vunpack.c.h.b16 %v1896
  %v2282 = vunpack.c.l.b16 %v1897
  %v2283 = vunpack.c.l.b16 %v1898
  %v2284 = vunpack.c.h.b16 %v1898
  %v2285 = vunpack.c.l.b16 %v1899
  %v2286 = vunpack.c.h.b16 %v1899
  %v2287 = vunpack.c.l.b16 %v1900
  %v2288 = vunpack.c.h.b16 %v1900
  %v2289 = vunpack.c.l.b16 %v1901
  %v2290 = vunpack.c.l.b16 %v1902
  %v2291 = vunpack.c.h.b16 %v1902
  %v2292 = vunpack.c.l.b16 %v1903
  %v2293 = vunpack.c.h.b16 %v1903
  %v2294 = vunpack.c.l.b16 %v1904
  %v2295 = vunpack.c.h.b16 %v1904
  %v2296 = vunpack.c.l.b16 %v1905
  %v2297 = vunpack.c.l.b16 %v1906
  %v2298 = vunpack.c.h.b16 %v1906
  %v2299 = vunpack.c.l.b16 %v1907
  %v2300 = vunpack.c.h.b16 %v1907
  %v2301 = vunpack.c.l.b16 %v1908
  %v2302 = vunpack.c.h.b16 %v1908
  %v2303 = vunpack.c.l.b16 %v1909
  %v2304 = vpack.c.b16 %v2087, %v2080
  %v2305 = vpack.c.b16 %v2088, %v2081
  %v2306 = vpack.c.b16 %v2089, %v2082
  %v2307 = vpack.c.b16 %v2090, %v2083
  %v2308 = vpack.c.b16 %v2091, %v2084
  %v2309 = vpack.c.b16 %v2092, %v2085
  %v2310 = vpack.c.b16 %v2093, %v2086
  %v2311 = vpack.c.b16 %v2101, %v2094
  %v2312 = vpack.c.b16 %v2102, %v2095
  %v2313 = vpack.c.b16 %v2103, %v2096
  %v2314 = vpack.c.b16 %v2104, %v2097
  %v2315 = vpack.c.b16 %v2105, %v2098
  %v2316 = vpack.c.b16 %v2106, %v2099
  %v2317 = vpack.c.b16 %v2107, %v2100
  %v2318 = vpack.c.b16 %v2115, %v2108
  %v2319 = vpack.c.b16 %v2116, %v2109
  %v2320 = vpack.c.b16 %v2117, %v2110
  %v2321 = vpack.c.b16 %v2118, %v2111
  %v2322 = vpack.c.b16 %v2119, %v2112
  %v2323 = vpack.c.b16 %v2120, %v2113
  %v2324 = vpack.c.b16 %v2121, %v2114
  %v2325 = vpack.c.b16 %v2129, %v2122
  %v2326 = vpack.c.b16 %v2130, %v2123
  %v2327 = vpack.c.b16 %v2131, %v2124
  %v2328 = vpack.c.b16 %v2132, %v2125
  %v2329 = vpack.c.b16 %v2133, %v2126
  %v2330 = vpack.c.b16 %v2134, %v2127
  %v2331 = vpack.c.b16 %v2135, %v2128
  %v2332 = vpack.c.b16 %v2143, %v2136
  %v2333 = vpack.c.b16 %v2144, %v2137
  %v2334 = vpack.c.b16 %v2145, %v2138
  %v2335 = vpack.c.b16 %v2146, %v2139
  %v2336 = vpack.c.b16 %v2147, %v2140
  %v2337 = vpack.c.b16 %v2148, %v2141
  %v2338 = vpack.c.b16 %v2149, %v2142
  %v2339 = vpack.c.b16 %v2157, %v2150
  %v2340 = vpack.c.b16 %v2158, %v2151
  %v2341 = vpack.c.b16 %v2159, %v2152
  %v2342 = vpack.c.b16 %v2160, %v2153
  %v2343 = vpack.c.b16 %v2161, %v2154
  %v2344 = vpack.c.b16 %v2162, %v2155
  %v2345 = vpack.c.b16 %v2163, %v2156
  %v2346 = vpack.c.b16 %v2171, %v2164
  %v2347 = vpack.c.b16 %v2172, %v2165
  %v2348 = vpack.c.b16 %v2173, %v2166
  %v2349 = vpack.c.b16 %v2174, %v2167
  %v2350 = vpack.c.b16 %v2175, %v2168
  %v2351 = vpack.c.b16 %v2176, %v2169
  %v2352 = vpack.c.b16 %v2177, %v2170
  %v2353 = vpack.c.b16 %v2185, %v2178
  %v2354 = vpack.c.b16 %v2186, %v2179
  %v2355 = vpack.c.b16 %v2187, %v2180
  %v2356 = vpack.c.b16 %v2188, %v2181
  %v2357 = vpack.c.b16 %v2189, %v2182
  %v2358 = vpack.c.b16 %v2190, %v2183
  %v2359 = vpack.c.b16 %v2191, %v2184
  %v2360 = vpack.c.b16 %v2199, %v2192
  %v2361 = vpack.c.b16 %v2200, %v2193
  %v2362 = vpack.c.b16 %v2201, %v2194
  %v2363 = vpack.c.b16 %v2202, %v2195
  %v2364 = vpack.c.b16 %v2203, %v2196
  %v2365 = vpack.c.b16 %v2204, %v2197
  %v2366 = vpack.c.b16 %v2205, %v2198
  %v2367 = vpack.c.b16 %v2213, %v2206
  %v2368 = vpack.c.b16 %v2214, %v2207
  %v2369 = vpack.c.b16 %v2215, %v2208
  %v2370 = vpack.c.b16 %v2216, %v2209
  %v2371 = vpack.c.b16 %v2217, %v2210
  %v2372 = vpack.c.b16 %v2218, %v2211
  %v2373 = vpack.c.b16 %v2219, %v2212
  %v2374 = vpack.c.b16 %v2227, %v2220
  %v2375 = vpack.c.b16 %v2228, %v2221
  %v2376 = vpack.c.b16 %v2229, %v2222
  %v2377 = vpack.c.b16 %v2230, %v2223
  %v2378 = vpack.c.b16 %v2231, %v2224
  %v2379 = vpack.c.b16 %v2232, %v2225
  %v2380 = vpack.c.b16 %v2233, %v2226
  %v2381 = vpack.c.b16 %v2241, %v2234
  %v2382 = vpack.c.b16 %v2242, %v2235
  %v2383 = vpack.c.b16 %v2243, %v2236
  %v2384 = vpack.c.b16 %v2244, %v2237
  %v2385 = vpack.c.b16 %v2245, %v2238
  %v2386 = vpack.c.b16 %v2246, %v2239
  %v2387 = vpack.c.b16 %v2247, %v2240
  %v2388 = vpack.c.b16 %v2255, %v2248
  %v2389 = vpack.c.b16 %v2256, %v2249
  %v2390 = vpack.c.b16 %v2257, %v2250
  %v2391 = vpack.c.b16 %v2258, %v2251
  %v2392 = vpack.c.b16 %v2259, %v2252
  %v2393 = vpack.c.b16 %v2260, %v2253
  %v2394 = vpack.c.b16 %v2261, %v2254
  %v2395 = vpack.c.b16 %v2269, %v2262
  %v2396 = vpack.c.b16 %v2270, %v2263
  %v2397 = vpack.c.b16 %v2271, %v2264
  %v2398 = vpack.c.b16 %v2272, %v2265
  %v2399 = vpack.c.b16 %v2273, %v2266
  %v2400 = vpack.c.b16 %v2274, %v2267
  %v2401 = vpack.c.b16 %v2275, %v2268
  %v2402 = vpack.c.b16 %v2283, %v2276
  %v2403 = vpack.c.b16 %v2284, %v2277
  %v2404 = vpack.c.b16 %v2285, %v2278
  %v2405 = vpack.c.b16 %v2286, %v2279
  %v2406 = vpack.c.b16 %v2287, %v2280
  %v2407 = vpack.c.b16 %v2288, %v2281
  %v2408 = vpack.c.b16 %v2289, %v2282
  %v2409 = vpack.c.b16 %v2297, %v2290
  %v2410 = vpack.c.b16 %v2298, %v2291
  %v2411 = vpack.c.b16 %v2299, %v2292
  %v2412 = vpack.c.b16 %v2300, %v2293
  %v2413 = vpack.c.b16 %v2301, %v2294
  %v2414 = vpack.c.b16 %v2302, %v2295
  %v2415 = vpack.c.b16 %v2303, %v2296
  %2528 = vmatprep.subr.bf16.mxu0 %v2354
  %2529 = vmatpush1.bf16.msra.mxu0 %v2353
  %2530 = vmatprep.subr.bf16.mxu0 %v2347
  %2531 = vmatpush1.bf16.msra.mxu0 %v2346
  %2532 = vmatprep.subr.bf16.mxu0 %v2340
  %2533 = vmatpush1.bf16.msra.mxu0 %v2339
  %2534 = vmatprep.subr.bf16.mxu0 %v2333
  %2535 = vmatpush1.bf16.msra.mxu0 %v2332
  %2536 = vmatprep.subr.bf16.mxu0 %v2326
  %2537 = vmatpush1.bf16.msra.mxu0 %v2325
  %2538 = vmatprep.subr.bf16.mxu0 %v2319
  %2539 = vmatpush1.bf16.msra.mxu0 %v2318
  %2540 = vmatprep.subr.bf16.mxu0 %v2312
  %2541 = vmatpush1.bf16.msra.mxu0 %v2311
  %2542 = vmatprep.subr.bf16.mxu0 %v2305
  %2543 = vmatpush1.bf16.msra.mxu0 %v2304
  %2544 = vmatprep.subr.bf16.mxu0 %v2410
  %2545 = vmatpush2.bf16.msra.mxu0 %v2409
  %2546 = vmatprep.subr.bf16.mxu0 %v2403
  %2547 = vmatpush2.bf16.msra.mxu0 %v2402
  %2548 = vmatprep.subr.bf16.mxu0 %v2396
  %2549 = vmatpush2.bf16.msra.mxu0 %v2395
  %2550 = vmatprep.subr.bf16.mxu0 %v2389
  %2551 = vmatpush2.bf16.msra.mxu0 %v2388
  %2552 = vmatprep.subr.bf16.mxu0 %v2382
  %2553 = vmatpush2.bf16.msra.mxu0 %v2381
  %2554 = vmatprep.subr.bf16.mxu0 %v2375
  %2555 = vmatpush2.bf16.msra.mxu0 %v2374
  %2556 = vmatprep.subr.bf16.mxu0 %v2368
  %2557 = vmatpush2.bf16.msra.mxu0 %v2367
  %2558 = vmatprep.subr.bf16.mxu0 %v2361
  %2559 = vmatpush2.bf16.msra.mxu0 %v2360
  %2560 = vmatprep.mubr.bf16.mxu0 %v1911
  %2561 = vmatmul.mubr.bf16.gmra.mxu0 %v1910
  %v2562 = vpop.f32.mrf.mxu0
  %v2563 = vadd.f32 %v1920, %v2562
  %v2564 = vpop.f32.mrf.mxu0
  %v2565 = vadd.f32 %v1924, %v2564
  %v2566 = vpop.f32.mrf.mxu0
  %v2567 = vpop.f32.mrf.mxu0
  %2568 = vdwg.mxu0
  %2569 = vmatprep.subr.bf16.mxu0 %v2356
  %2570 = vmatpush1.bf16.msra.mxu0 %v2355
  %2571 = vmatprep.subr.bf16.mxu0 %v2349
  %2572 = vmatpush1.bf16.msra.mxu0 %v2348
  %2573 = vmatprep.subr.bf16.mxu0 %v2342
  %2574 = vmatpush1.bf16.msra.mxu0 %v2341
  %2575 = vmatprep.subr.bf16.mxu0 %v2335
  %2576 = vmatpush1.bf16.msra.mxu0 %v2334
  %2577 = vmatprep.subr.bf16.mxu0 %v2328
  %2578 = vmatpush1.bf16.msra.mxu0 %v2327
  %2579 = vmatprep.subr.bf16.mxu0 %v2321
  %2580 = vmatpush1.bf16.msra.mxu0 %v2320
  %2581 = vmatprep.subr.bf16.mxu0 %v2314
  %2582 = vmatpush1.bf16.msra.mxu0 %v2313
  %2583 = vmatprep.subr.bf16.mxu0 %v2307
  %2584 = vmatpush1.bf16.msra.mxu0 %v2306
  %2585 = vmatprep.subr.bf16.mxu0 %v2412
  %2586 = vmatpush2.bf16.msra.mxu0 %v2411
  %2587 = vmatprep.subr.bf16.mxu0 %v2405
  %2588 = vmatpush2.bf16.msra.mxu0 %v2404
  %2589 = vmatprep.subr.bf16.mxu0 %v2398
  %2590 = vmatpush2.bf16.msra.mxu0 %v2397
  %2591 = vmatprep.subr.bf16.mxu0 %v2391
  %2592 = vmatpush2.bf16.msra.mxu0 %v2390
  %2593 = vmatprep.subr.bf16.mxu0 %v2384
  %2594 = vmatpush2.bf16.msra.mxu0 %v2383
  %2595 = vmatprep.subr.bf16.mxu0 %v2377
  %2596 = vmatpush2.bf16.msra.mxu0 %v2376
  %2597 = vmatprep.subr.bf16.mxu0 %v2370
  %2598 = vmatpush2.bf16.msra.mxu0 %v2369
  %2599 = vmatprep.subr.bf16.mxu0 %v2363
  %2600 = vmatpush2.bf16.msra.mxu0 %v2362
  %2601 = vmatprep.mubr.bf16.mxu0 %v1911
  %2602 = vmatmul.mubr.bf16.gmra.mxu0 %v1910
  %v2603 = vpop.f32.mrf.mxu0
  %v2604 = vadd.f32 %v1928, %v2603
  %v2605 = vpop.f32.mrf.mxu0
  %v2606 = vadd.f32 %v1932, %v2605
  %v2607 = vpop.f32.mrf.mxu0
  %v2608 = vpop.f32.mrf.mxu0
  %2609 = vdwg.mxu0
  %2610 = vmatprep.subr.bf16.mxu0 %v2358
  %2611 = vmatpush1.bf16.msra.mxu0 %v2357
  %2612 = vmatprep.subr.bf16.mxu0 %v2351
  %2613 = vmatpush1.bf16.msra.mxu0 %v2350
  %2614 = vmatprep.subr.bf16.mxu0 %v2344
  %2615 = vmatpush1.bf16.msra.mxu0 %v2343
  %2616 = vmatprep.subr.bf16.mxu0 %v2337
  %2617 = vmatpush1.bf16.msra.mxu0 %v2336
  %2618 = vmatprep.subr.bf16.mxu0 %v2330
  %2619 = vmatpush1.bf16.msra.mxu0 %v2329
  %2620 = vmatprep.subr.bf16.mxu0 %v2323
  %2621 = vmatpush1.bf16.msra.mxu0 %v2322
  %2622 = vmatprep.subr.bf16.mxu0 %v2316
  %2623 = vmatpush1.bf16.msra.mxu0 %v2315
  %2624 = vmatprep.subr.bf16.mxu0 %v2309
  %2625 = vmatpush1.bf16.msra.mxu0 %v2308
  %2626 = vmatprep.subr.bf16.mxu0 %v2414
  %2627 = vmatpush2.bf16.msra.mxu0 %v2413
  %2628 = vmatprep.subr.bf16.mxu0 %v2407
  %2629 = vmatpush2.bf16.msra.mxu0 %v2406
  %2630 = vmatprep.subr.bf16.mxu0 %v2400
  %2631 = vmatpush2.bf16.msra.mxu0 %v2399
  %2632 = vmatprep.subr.bf16.mxu0 %v2393
  %2633 = vmatpush2.bf16.msra.mxu0 %v2392
  %2634 = vmatprep.subr.bf16.mxu0 %v2386
  %2635 = vmatpush2.bf16.msra.mxu0 %v2385
  %2636 = vmatprep.subr.bf16.mxu0 %v2379
  %2637 = vmatpush2.bf16.msra.mxu0 %v2378
  %2638 = vmatprep.subr.bf16.mxu0 %v2372
  %2639 = vmatpush2.bf16.msra.mxu0 %v2371
  %2640 = vmatprep.subr.bf16.mxu0 %v2365
  %2641 = vmatpush2.bf16.msra.mxu0 %v2364
  %2642 = vmatprep.mubr.bf16.mxu0 %v1911
  %2643 = vmatmul.mubr.bf16.gmra.mxu0 %v1910
  %v2644 = vpop.f32.mrf.mxu0
  %v2645 = vadd.f32 %v1936, %v2644
  %v2646 = vpop.f32.mrf.mxu0
  %v2647 = vadd.f32 %v1940, %v2646
  %v2648 = vpop.f32.mrf.mxu0
  %v2649 = vpop.f32.mrf.mxu0
  %2650 = vdwg.mxu0
  %2651 = vmatprep.subr.bf16.mxu0 0
  %2652 = vmatpush1.bf16.msra.mxu0 %v2359
  %2653 = vmatprep.subr.bf16.mxu0 0
  %2654 = vmatpush1.bf16.msra.mxu0 %v2352
  %2655 = vmatprep.subr.bf16.mxu0 0
  %2656 = vmatpush1.bf16.msra.mxu0 %v2345
  %2657 = vmatprep.subr.bf16.mxu0 0
  %2658 = vmatpush1.bf16.msra.mxu0 %v2338
  %2659 = vmatprep.subr.bf16.mxu0 0
  %2660 = vmatpush1.bf16.msra.mxu0 %v2331
  %2661 = vmatprep.subr.bf16.mxu0 0
  %2662 = vmatpush1.bf16.msra.mxu0 %v2324
  %2663 = vmatprep.subr.bf16.mxu0 0
  %2664 = vmatpush1.bf16.msra.mxu0 %v2317
  %2665 = vmatprep.subr.bf16.mxu0 0
  %2666 = vmatpush1.bf16.msra.mxu0 %v2310
  %2667 = vmatprep.subr.bf16.mxu0 0
  %2668 = vmatpush2.bf16.msra.mxu0 %v2415
  %2669 = vmatprep.subr.bf16.mxu0 0
  %2670 = vmatpush2.bf16.msra.mxu0 %v2408
  %2671 = vmatprep.subr.bf16.mxu0 0
  %2672 = vmatpush2.bf16.msra.mxu0 %v2401
  %2673 = vmatprep.subr.bf16.mxu0 0
  %2674 = vmatpush2.bf16.msra.mxu0 %v2394
  %2675 = vmatprep.subr.bf16.mxu0 0
  %2676 = vmatpush2.bf16.msra.mxu0 %v2387
  %2677 = vmatprep.subr.bf16.mxu0 0
  %2678 = vmatpush2.bf16.msra.mxu0 %v2380
  %2679 = vmatprep.subr.bf16.mxu0 0
  %2680 = vmatpush2.bf16.msra.mxu0 %v2373
  %2681 = vmatprep.subr.bf16.mxu0 0
  %2682 = vmatpush2.bf16.msra.mxu0 %v2366
  %2683 = vmatprep.mubr.bf16.mxu0 %v1911
  %2684 = vmatmul.mubr.bf16.gmra.mxu0 %v1910
  %v2685 = vpop.f32.mrf.mxu0
  %v2686 = vadd.f32 %v1944, %v2685
  %v2687 = vpop.f32.mrf.mxu0
  %v2688 = vpop.f32.mrf.mxu0
  %v2689 = vpop.f32.mrf.mxu0
  %2690 = vdwg.mxu0
  %v2691 = vtanh.pop %v2563
  %v2692 = vtanh.pop %v2565
  %v2693 = vtanh.pop %v2604
  %v2694 = vtanh.pop %v2606
  %v2695 = vtanh.pop %v2645
  %v2696 = vtanh.pop %v2647
  %v2697 = vtanh.pop %v2686
  %2698 = vst [vmem:[%s10] sm:$0xff] %v1403
  %2699 = vst [vmem:[%s10 + $0x8] sm:$0xff] %v1405
  %2700 = vst [vmem:[%s11] sm:$0xff] %v2691
  %2701 = vst [vmem:[%s11 + $0x8] sm:$0xff] %v2692
  %2702 = vst [vmem:[%s11 + $0x10] sm:$0xff] %v2693
  %2703 = vst [vmem:[%s11 + $0x18] sm:$0xff] %v2694
  %2704 = vst [vmem:[%s11 + $0x20] sm:$0xff] %v2695
  %2705 = vst [vmem:[%s11 + $0x28] sm:$0xff] %v2696
  %2706 = vst.msk [vmem:[%s11 + $0x30] sm:$0xff] %vm666, %v2697
  // Predicated region
  $region42: #{vae_forward.1} parent=0 // pred_check
    _
  $region43: #{vae_forward.1} parent=0 // pred_check_branch
    %2708 = sbr.rel (0) target = $region45
  $region44: #{vae_forward.1} parent=0 // pred_region
    _
  $region45: #{vae_forward.1} parent=0 // pred_fallthru
    _
  // Predicated region
  $region46: #{vae_forward.1} parent=0 // pred_check
    _
  $region47: #{vae_forward.1} parent=0 // pred_check_branch
    %2710 = sbr.rel (0) target = $region49
  $region48: #{vae_forward.1} parent=0 // pred_region
    _
  $region49: #{vae_forward.1} parent=0 // pred_fallthru
    _
  // Predicated region
  $region50: #{vae_forward.1} parent=0 // pred_check
    _
  $region51: #{vae_forward.1} parent=0 // pred_check_branch
    %2712 = sbr.rel (0) target = $region53
  $region52: #{vae_forward.1} parent=0 // pred_region
    _
  $region53: #{vae_forward.1} parent=0 // pred_fallthru
    _
  // Predicated region
  $region54: #{vae_forward.1} parent=0 // pred_check
    _
  $region55: #{vae_forward.1} parent=0 // pred_check_branch
    %2714 = sbr.rel (0) target = $region57
  $region56: #{vae_forward.1} parent=0 // pred_region
    _
  $region57: #{vae_forward.1} parent=0 // pred_fallthru
    _

</llo_original>
